<compile_context>
chip_gen: v5e
topology: v5e:2x2
jax: 0.10.0
libtpu: 0.0.40
codegen_flags: <defaults>
</compile_context>

<pallas_src>
import numpy as np
import jax
import jax.numpy as jnp
from jax.experimental import pallas as pl
from jax.experimental.pallas import tpu as pltpu

# ------------------------------ configuration ------------------------------
N_FFT = 256
HOP = 128               # N_FFT == 2 * HOP (required by the shift-based framing / OLA)
N_FREQ = 128            # 128 frequency bins (drop Nyquist) — lane friendly
N_MELS = 64
N_MELS_PAD = 128        # lane-dense padded mel width
HIDDEN = 128
TEMB_DIM = 32
NUM_TRAIN_TIMESTEPS = 1000


# ------------------------------ small helpers ------------------------------
def _round_up(x, m):
    return ((x + m - 1) // m) * m


def _row_plan(m_rows):
    """(padded rows, row tile, grid).  Rows sublane-aligned, >=2 tiles when possible
    (v7x dual TC), tiles capped at 1024 rows (fits v7x 64 MiB VMEM with headroom)."""
    if m_rows <= 8:
        return 8, 8, 1
    tm = min(1024, _round_up((m_rows + 1) // 2, 8))
    mpad = _round_up(m_rows, tm)
    return mpad, tm, mpad // tm


def _cparams(semantics):
    return pltpu.CompilerParams(
        dimension_semantics=semantics,
        vmem_limit_bytes=32 * 1024 * 1024,
    )


def _pad_rows(x2d, mpad):
    m = x2d.shape[0]
    if m == mpad:
        return x2d
    return jnp.pad(x2d, ((0, mpad - m), (0, 0)))


# ------------------------------ Pallas kernels ------------------------------
def _fused_sample_kernel(coefs_ref, frames_ref, noise_ref, tbias_ref,
                         basis_ref, melfb_ref,
                         w1_ref, w2_ref, b2_ref, wv_ref, bv_ref,
                         o_ref, x_acc):
    """Grid (row_tiles, num_steps).  Step 0: STFT->mel->log-mel + add_noise into the
    VMEM accumulator.  Every step: UNet MLP + DDIM update in-place.  Last step:
    vocoder matmul + softplus into the output block."""
    j = pl.program_id(1)

    @pl.when(j == 0)
    def _init():
        # window is folded into basis_ref -> pure matmul + epilogue
        reim = jnp.dot(frames_ref[...].astype(jnp.bfloat16), basis_ref[...],
                       preferred_element_type=jnp.float32)            # [tm, 2*N_FREQ]
        re = reim[:, :N_FREQ]
        im = reim[:, N_FREQ:]
        mag = jnp.sqrt(re * re + im * im + 1e-12)
        mel = jnp.dot(mag.astype(jnp.bfloat16), melfb_ref[...],
                      preferred_element_type=jnp.float32)              # [tm, N_MELS_PAD]
        spec = 0.5 * (jnp.log1p(mel) - 2.0)                            # fixed normalization
        # add_noise (coefs row 0, cols 0/1); (0,1) when not seeding from the input
        x_acc[...] = coefs_ref[0, 0] * spec + coefs_ref[0, 1] * noise_ref[...]

    x = x_acc[...]                                                     # f32 [tm, 128]
    tb = tbias_ref[...].reshape(1, HIDDEN)                             # per-step time bias
    h = jnp.dot(x.astype(jnp.bfloat16), w1_ref[...],
                preferred_element_type=jnp.float32) + tb
    # SiLU: exp + approx reciprocal both live on the EUP slot (off the VALU)
    h = h * pl.reciprocal(1.0 + jnp.exp(-h), approx=True)
    eps = jnp.dot(h.astype(jnp.bfloat16), w2_ref[...],
                  preferred_element_type=jnp.float32) + b2_ref[...]
    # DDIM update: x0 = (x - c1*eps)*c0 ; x_next = c2*x0 + c3*eps
    x0 = (x - coefs_ref[j, 3] * eps) * coefs_ref[j, 2]
    x_new = coefs_ref[j, 4] * x0 + coefs_ref[j, 5] * eps
    x_acc[...] = x_new

    @pl.when(j == pl.num_programs(1) - 1)
    def _final():
        hv = jnp.dot(x_new.astype(jnp.bfloat16), wv_ref[...],
                     preferred_element_type=jnp.float32) + bv_ref[...]
        # numerically stable softplus -> non-negative magnitudes
        o_ref[...] = jnp.maximum(hv, 0.0) + jnp.log1p(jnp.exp(-jnp.abs(hv)))


def pallas_fused_sample(coefs, frames_flat, noise_flat, tbias,
                        basis, melfb, w1, w2, b2, wv, bv,
                        tm, grid_rows, num_steps):
    mpad = frames_flat.shape[0]
    return pl.pallas_call(
        _fused_sample_kernel,
        out_shape=jax.ShapeDtypeStruct((mpad, N_FREQ), jnp.float32),
        grid=(grid_rows, num_steps),
        in_specs=[
            pl.BlockSpec(memory_space=pltpu.MemorySpace.SMEM),           # DDIM coef table
            pl.BlockSpec((tm, N_FFT), lambda i, j: (i, 0)),              # frames (DMA'd once per row tile)
            pl.BlockSpec((tm, N_MELS_PAD), lambda i, j: (i, 0)),         # noise
            pl.BlockSpec((1, 1, HIDDEN), lambda i, j: (j, 0, 0)),        # per-step time bias
            pl.BlockSpec((N_FFT, 2 * N_FREQ), lambda i, j: (0, 0)),      # windowed DFT basis
            pl.BlockSpec((N_FREQ, N_MELS_PAD), lambda i, j: (0, 0)),     # mel filterbank
            pl.BlockSpec((N_MELS_PAD, HIDDEN), lambda i, j: (0, 0)),     # unet w1
            pl.BlockSpec((HIDDEN, N_MELS_PAD), lambda i, j: (0, 0)),     # unet w2
            pl.BlockSpec((1, N_MELS_PAD), lambda i, j: (0, 0)),          # unet b2
            pl.BlockSpec((N_MELS_PAD, N_FREQ), lambda i, j: (0, 0)),     # vocoder w
            pl.BlockSpec((1, N_FREQ), lambda i, j: (0, 0)),              # vocoder b
        ],
        out_specs=pl.BlockSpec((tm, N_FREQ), lambda i, j: (i, 0)),
        scratch_shapes=[pltpu.VMEM((tm, N_MELS_PAD), jnp.float32)],       # resident spectrogram
        compiler_params=_cparams(("parallel", "arbitrary")),
    )(coefs, frames_flat, noise_flat, tbias, basis, melfb, w1, w2, b2, wv, bv)


def _idft_kernel(reim_ref, ibasis_ref, o_ref):
    # synthesis window already folded into ibasis
    o_ref[...] = jnp.dot(reim_ref[...].astype(jnp.bfloat16), ibasis_ref[...],
                         preferred_element_type=jnp.float32)


def pallas_idft(reim, ibasis, tm, grid_rows):
    mpad, k = reim.shape
    n = ibasis.shape[1]
    return pl.pallas_call(
        _idft_kernel,
        out_shape=jax.ShapeDtypeStruct((mpad, n), jnp.float32),
        grid=(grid_rows,),
        in_specs=[pl.BlockSpec((tm, k), lambda i: (i, 0)),
                  pl.BlockSpec((k, n), lambda i: (0, 0))],
        out_specs=pl.BlockSpec((tm, n), lambda i: (i, 0)),
        compiler_params=_cparams(("parallel",)),
    )(reim, ibasis)


def _stft_project_kernel(frames_ref, basis_ref, s_ref, o_ref):
    # fused re-analysis STFT + Griffin-Lim magnitude projection (window in basis)
    reim = jnp.dot(frames_ref[...].astype(jnp.bfloat16), basis_ref[...],
                   preferred_element_type=jnp.float32)                 # [tm, 2*N_FREQ]
    re = reim[:, :N_FREQ]
    im = reim[:, N_FREQ:]
    inv = s_ref[...] * jax.lax.rsqrt(re * re + im * im + 1e-12)
    o_ref[:, :N_FREQ] = re * inv                                       # lane-aligned direct stores
    o_ref[:, N_FREQ:] = im * inv


def pallas_stft_project(frames_flat, basis, s_flat, tm, grid_rows):
    mpad, k = frames_flat.shape
    nout = basis.shape[1]
    return pl.pallas_call(
        _stft_project_kernel,
        out_shape=jax.ShapeDtypeStruct((mpad, nout), jnp.float32),
        grid=(grid_rows,),
        in_specs=[pl.BlockSpec((tm, k), lambda i: (i, 0)),
                  pl.BlockSpec((k, nout), lambda i: (0, 0)),
                  pl.BlockSpec((tm, N_FREQ), lambda i: (i, 0))],
        out_specs=pl.BlockSpec((tm, nout), lambda i: (i, 0)),
        compiler_params=_cparams(("parallel",)),
    )(frames_flat, basis, s_flat)


# ------------------------------ deterministic helpers ------------------------------
def _mel_filterbank(n_freq, n_mels, sr=16000.0):
    def hz_to_mel(f):
        return 2595.0 * np.log10(1.0 + f / 700.0)

    def mel_to_hz(m):
        return 700.0 * (10.0 ** (m / 2595.0) - 1.0)

    mels = np.linspace(hz_to_mel(0.0), hz_to_mel(sr / 2.0), n_mels + 2)
    hz = mel_to_hz(mels)
    bins = np.clip(np.floor((2 * n_freq) * hz / sr).astype(int), 0, n_freq - 1)
    fb = np.zeros((n_freq, n_mels), dtype=np.float32)
    for m in range(n_mels):
        l, c, r = bins[m], bins[m + 1], bins[m + 2]
        if c <= l:
            c = l + 1
        if r <= c:
            r = c + 1
        for i in range(l, min(c, n_freq)):
            fb[i, m] = (i - l) / (c - l)
        for i in range(c, min(r, n_freq)):
            fb[i, m] = (r - i) / (r - c)
    return fb


# ------------------------------ modules ------------------------------
class Transforms:
    """waveform [B,C,T] -> flat frames; DFT/mel bases (windows pre-folded); Griffin-Lim."""

    def __init__(self):
        n = np.arange(N_FFT)
        k = np.arange(N_FREQ)
        win = np.hanning(N_FFT)
        ang = 2.0 * np.pi * np.outer(n, k) / N_FFT                            # [N_FFT, N_FREQ]
        fwd = np.concatenate([np.cos(ang), -np.sin(ang)], axis=1)             # [N_FFT, 2*N_FREQ]
        # analysis window folded into the forward basis (one MXU matmul, no window operand)
        self.basis = jnp.asarray(win[:, None] * fwd, jnp.bfloat16)
        w = np.full((N_FREQ,), 2.0)
        w[0] = 1.0
        iang = 2.0 * np.pi * np.outer(k, n) / N_FFT                           # [N_FREQ, N_FFT]
        icos = w[:, None] * np.cos(iang) / N_FFT
        isin = -w[:, None] * np.sin(iang) / N_FFT
        inv = np.concatenate([icos, isin], axis=0)                            # [2*N_FREQ, N_FFT]
        # synthesis window folded into the inverse basis
        self.ibasis = jnp.asarray(inv * win[None, :], jnp.bfloat16)
        self.window_np = win.astype(np.float32)
        melfb = _mel_filterbank(N_FREQ, N_MELS)
        melfb_pad = np.zeros((N_FREQ, N_MELS_PAD), np.float32)                # lane-pad 64 -> 128
        melfb_pad[:, :N_MELS] = melfb
        self.mel_fb = jnp.asarray(melfb_pad, jnp.bfloat16)

    # ---- framing via reshape + concat (no XLA gather), N_FFT == 2*HOP ----
    def frame_flat(self, x, mpad):
        B, C, T = x.shape
        assert T % HOP == 0 and T >= N_FFT, "audio length must be a multiple of HOP"
        blocks = x.reshape(B, C, T // HOP, HOP).astype(jnp.float32)
        frames = jnp.concatenate([blocks[:, :, :-1, :], blocks[:, :, 1:, :]], axis=-1)
        F = T // HOP - 1
        flat = frames.reshape(B * C * F, N_FFT)
        return _pad_rows(flat, mpad)

    # ---- overlap-add via shifted block adds (no scatter-add) ----
    def overlap_add(self, frames_valid, B, C, F):
        fr = frames_valid.reshape(B, C, F, N_FFT)
        first = fr[..., :HOP]
        second = fr[..., HOP:]
        zeros = jnp.zeros((B, C, 1, HOP), jnp.float32)
        y_blocks = (jnp.concatenate([first, zeros], axis=2)
                    + jnp.concatenate([zeros, second], axis=2))               # [B,C,F+1,HOP]
        y = y_blocks.reshape(B, C, (F + 1) * HOP)
        w2 = self.window_np ** 2
        wss = np.concatenate([w2[:HOP]] + [w2[:HOP] + w2[HOP:]] * (F - 1) + [w2[HOP:]])
        wss = jnp.asarray(np.maximum(wss, 1e-8), jnp.float32)
        return y / wss

    def griffin_lim(self, s_flat, meta, length=None, num_iters=2):
        # TODO(synk): fuse overlap-add / re-framing into the GL kernels with a one-row halo
        #             (each hop depends on only two adjacent frames) to remove the remaining
        #             per-iteration HBM round trips.
        B, C, F, m0, mpad, tm, grid_rows = meta
        reim = jnp.concatenate([s_flat, jnp.zeros_like(s_flat)], axis=1)      # zero initial phase
        for _ in range(num_iters):
            frames = pallas_idft(reim, self.ibasis, tm, grid_rows)
            y = self.overlap_add(frames[:m0], B, C, F)
            frames2 = self.frame_flat(y, mpad)
            reim = pallas_stft_project(frames2, self.basis, s_flat, tm, grid_rows)
        frames = pallas_idft(reim, self.ibasis, tm, grid_rows)
        y = self.overlap_add(frames[:m0], B, C, F)
        if length is not None:
            if y.shape[-1] >= length:
                y = y[..., :length]
            else:
                y = jnp.pad(y, ((0, 0), (0, 0), (0, length - y.shape[-1])))
        return y


class Vocoder:
    """mel spectrogram -> linear magnitude (fused into the sampling kernel)."""

    def __init__(self, key):
        k1, k2 = jax.random.split(key)
        w = jax.random.normal(k1, (N_MELS, N_FREQ), jnp.float32) / np.sqrt(N_MELS)
        w_pad = jnp.zeros((N_MELS_PAD, N_FREQ), jnp.float32).at[:N_MELS].set(w)
        self.w = w_pad.astype(jnp.bfloat16)                                   # zero rows mask mel padding
        self.b = 0.01 * jax.random.normal(k2, (1, N_FREQ), jnp.float32)


class UNet:
    """Simplified denoiser: per-frame MLP over mel bins with sinusoidal timestep conditioning."""

    def __init__(self, key):
        ks = jax.random.split(key, 3)
        w1 = jax.random.normal(ks[0], (N_MELS, HIDDEN), jnp.float32) / np.sqrt(N_MELS)
        self.w1 = jnp.zeros((N_MELS_PAD, HIDDEN), jnp.float32).at[:N_MELS].set(w1).astype(jnp.bfloat16)
        self.b1 = jnp.zeros((1, HIDDEN), jnp.float32)
        w2 = jax.random.normal(ks[1], (HIDDEN, N_MELS), jnp.float32) / np.sqrt(HIDDEN)
        self.w2 = jnp.zeros((HIDDEN, N_MELS_PAD), jnp.float32).at[:, :N_MELS].set(w2).astype(jnp.bfloat16)
        self.b2 = jnp.zeros((1, N_MELS_PAD), jnp.float32)
        self.wt = jax.random.normal(ks[2], (TEMB_DIM, HIDDEN), jnp.float32) / np.sqrt(TEMB_DIM)

    def time_bias_table(self, timesteps):
        """[num_steps, 1, HIDDEN] effective first-layer bias (b1 + temb @ wt) per step."""
        half = TEMB_DIM // 2
        freqs = np.exp(-np.log(10000.0) * np.arange(half) / half)
        ts = np.asarray(timesteps, np.float32)[:, None]
        ang = ts * freqs[None, :]
        temb = np.concatenate([np.sin(ang), np.cos(ang)], axis=1).astype(np.float32)  # [S, TEMB]
        tb = self.b1 + jnp.dot(jnp.asarray(temb), self.wt)                             # [S, HIDDEN]
        return tb.reshape(len(timesteps), 1, HIDDEN)


class DDIMScheduler:
    def __init__(self, num_train_timesteps=NUM_TRAIN_TIMESTEPS, beta_start=1e-4, beta_end=0.02):
        betas = np.linspace(beta_start, beta_end, num_train_timesteps, dtype=np.float64)
        self.alphas_cumprod = np.cumprod(1.0 - betas)
        self.num_train_timesteps = num_train_timesteps
        self.timesteps = None
        self.step_ratio = None

    def set_timesteps(self, num_inference_steps):
        self.step_ratio = self.num_train_timesteps // num_inference_steps
        self.timesteps = (np.arange(num_inference_steps) * self.step_ratio)[::-1].copy()

    def add_noise_coefs(self, t):
        a = float(np.sqrt(self.alphas_cumprod[t]))
        b = float(np.sqrt(1.0 - self.alphas_cumprod[t]))
        return a, b

    def step_coefs(self, t):
        a_t = self.alphas_cumprod[t]
        t_prev = t - self.step_ratio
        a_prev = self.alphas_cumprod[t_prev] if t_prev >= 0 else 1.0
        return (float(1.0 / np.sqrt(a_t)), float(np.sqrt(1.0 - a_t)),
                float(np.sqrt(a_prev)), float(np.sqrt(1.0 - a_prev)))


class Sampler:
    def __init__(self, unet, scheduler):
        self.unet = unet
        self.scheduler = scheduler

    def compute_timesteps(self, num_inference_steps, strength=1.0):
        self.scheduler.set_timesteps(num_inference_steps)
        init_t = min(int(num_inference_steps * strength), num_inference_steps)
        t_start = max(num_inference_steps - init_t, 0)
        return self.scheduler.timesteps[t_start:]


class Pipeline:
    def __init__(self, transforms, vocoder, unet, scheduler):
        self.transforms = transforms
        self.vocoder = vocoder
        self.unet = unet
        self.scheduler = scheduler
        self._jit_cache = {}   # (shape, steps, strength, seed-flag, gl-iters) -> jitted fn

    def sample(self, x, num_inference_steps=4, strength=1.0, key=None,
               use_input_as_seed=True, num_griffin_lim_iters=2):
        cache_key = (tuple(x.shape), str(x.dtype), int(num_inference_steps),
                     float(strength), bool(use_input_as_seed), int(num_griffin_lim_iters))
        fn = self._jit_cache.get(cache_key)
        if fn is None:
            fn = self._build_sample_fn(tuple(x.shape), num_inference_steps, strength,
                                       use_input_as_seed, num_griffin_lim_iters)
            self._jit_cache[cache_key] = fn
        return fn(x, key)

    def _build_sample_fn(self, shape, num_inference_steps, strength,
                         use_input_as_seed, num_griffin_lim_iters):
        B, C, T = shape
        F = T // HOP - 1
        m0 = B * C * F
        mpad, tm, grid_rows = _row_plan(m0)

        sampler = Sampler(self.unet, self.scheduler)
        timesteps = sampler.compute_timesteps(num_inference_steps, strength)
        num_steps = len(timesteps)
        assert num_steps >= 1, "need at least one diffusion step"

        # host-side DDIM / add-noise coefficient table -> single SMEM operand
        coefs_np = np.zeros((num_steps, 8), np.float32)
        if use_input_as_seed:
            a, b = self.scheduler.add_noise_coefs(int(timesteps[0]))
            coefs_np[0, 0], coefs_np[0, 1] = a, b
        else:
            coefs_np[0, 0], coefs_np[0, 1] = 0.0, 1.0                          # x = pure noise
        for s, t in enumerate(timesteps):
            c0, c1, c2, c3 = self.scheduler.step_coefs(int(t))
            coefs_np[s, 2:6] = (c0, c1, c2, c3)
        coefs = jnp.asarray(coefs_np)
        tbias = self.unet.time_bias_table(timesteps)                            # [S,1,HIDDEN]

        transforms, unet, vocoder = self.transforms, self.unet, self.vocoder

        def _impl(xw, k):
            frames = transforms.frame_flat(xw, mpad)                            # [Mpad, 256]
            noise = jax.random.normal(k, (mpad, N_MELS_PAD), jnp.float32)
            # one fused kernel: transforms + add_noise + all DDIM steps + vocoder
            S = pallas_fused_sample(coefs, frames, noise, tbias,
                                    transforms.basis, transforms.mel_fb,
                                    unet.w1, unet.w2, unet.b2,
                                    vocoder.w, vocoder.b,
                                    tm, grid_rows, num_steps)                   # [Mpad, N_FREQ]
            meta = (B, C, F, m0, mpad, tm, grid_rows)
            return transforms.griffin_lim(S, meta, length=T,
                                          num_iters=num_griffin_lim_iters)

        return jax.jit(_impl)


# ------------------------------ main ------------------------------
if __name__ == "__main__":
    key = jax.random.PRNGKey(0)
    k_x, k_noise, k_unet, k_voc = jax.random.split(key, 4)

    B, C, T = 2, 1, 2048
    x = jax.random.normal(k_x, (B, C, T), jnp.float32)

    pipe = Pipeline(Transforms(), Vocoder(k_voc), UNet(k_unet), DDIMScheduler())
    y = pipe.sample(x, num_inference_steps=4, strength=1.0, key=k_noise,
                    use_input_as_seed=True, num_griffin_lim_iters=2)
    y = jax.block_until_ready(y)

    # second call hits the cached jit (no retrace / recompile)
    y2 = pipe.sample(x, num_inference_steps=4, strength=1.0, key=k_noise,
                     use_input_as_seed=True, num_griffin_lim_iters=2)
    y2 = jax.block_until_ready(y2)

    assert y.shape == (B, C, T), y.shape
    assert bool(jnp.all(jnp.isfinite(y)))
    assert bool(jnp.allclose(y, y2))
    print("KERNEL_OK")
</pallas_src>

<mosaic_0001>
module attributes {stable_mosaic.version = 11 : i64} {
  func.func @_idft_kernel(%arg0: i32, %arg1: memref<16x256xf32, #tpu.memory_space<vmem>>, %arg2: memref<256x256xbf16, #tpu.memory_space<vmem>>, %arg3: memref<16x256xf32, #tpu.memory_space<vmem>>) attributes {dimension_semantics = [#tpu.dimension_semantics<parallel>], iteration_bounds = array<i64: 2>, scalar_prefetch = 0 : i64, scratch_operands = 0 : i64, tpu.core_type = #tpu.core_type<tc>, window_params = [{transform_indices = @transform_0, window_bounds = array<i64: 16, 256>}, {pipeline_mode = #tpu.pipeline_mode<synchronous>, transform_indices = @transform_1, window_bounds = array<i64: 256, 256>}, {transform_indices = @transform_2, window_bounds = array<i64: 16, 256>}]} {
    %c0 = arith.constant 0 : index
    %c0_0 = arith.constant 0 : index
    %0 = vector.load %arg1[%c0, %c0_0] : memref<16x256xf32, #tpu.memory_space<vmem>>, vector<16x256xf32>
    %1 = arith.truncf %0 : vector<16x256xf32> to vector<16x256xbf16>
    %c0_1 = arith.constant 0 : index
    %c0_2 = arith.constant 0 : index
    %2 = vector.load %arg2[%c0_1, %c0_2] : memref<256x256xbf16, #tpu.memory_space<vmem>>, vector<256x256xbf16>
    %cst = arith.constant dense<0.000000e+00> : vector<16x256xf32>
    %3 = tpu.matmul %1, %2, %cst {dimension_numbers = #tpu.dot_dimension_numbers<[1], [0], [0], [1], [0, 0, 1, 1], [], []>} : vector<16x256xbf16>, vector<256x256xbf16>, vector<16x256xf32> -> vector<16x256xf32>
    %c0_3 = arith.constant 0 : index
    %c0_4 = arith.constant 0 : index
    %4 = vector.load %arg3[%c0_3, %c0_4] : memref<16x256xf32, #tpu.memory_space<vmem>>, vector<16x256xf32>
    tpu.vector_store %arg3[%c0_3, %c0_4], %3 {strides = array<i32>} : memref<16x256xf32, #tpu.memory_space<vmem>>, vector<16x256xf32>,
    return
  }
  func.func @transform_0(%arg0: i32) -> (i32, i32) {
    %c0_i32 = arith.constant 0 : i32
    %c0_i32_0 = arith.constant 0 : i32
    return %arg0, %c0_i32 : i32, i32
  }
  func.func @transform_1(%arg0: i32) -> (i32, i32) {
    %c0_i32 = arith.constant 0 : i32
    %c0_i32_0 = arith.constant 0 : i32
    %c0_i32_1 = arith.constant 0 : i32
    return %c0_i32, %c0_i32_0 : i32, i32
  }
  func.func @transform_2(%arg0: i32) -> (i32, i32) {
    %c0_i32 = arith.constant 0 : i32
    %c0_i32_0 = arith.constant 0 : i32
    return %arg0, %c0_i32 : i32, i32
  }
}

module attributes {stable_mosaic.version = 11 : i64} {
  func.func @_fused_sample_kernel(%arg0: i32, %arg1: i32, %arg2: memref<4x8xf32, #tpu.memory_space<smem>>, %arg3: memref<16x256xf32, #tpu.memory_space<vmem>>, %arg4: memref<16x128xf32, #tpu.memory_space<vmem>>, %arg5: memref<1x1x128xf32, #tpu.memory_space<vmem>>, %arg6: memref<256x256xbf16, #tpu.memory_space<vmem>>, %arg7: memref<128x128xbf16, #tpu.memory_space<vmem>>, %arg8: memref<128x128xbf16, #tpu.memory_space<vmem>>, %arg9: memref<128x128xbf16, #tpu.memory_space<vmem>>, %arg10: memref<1x128xf32, #tpu.memory_space<vmem>>, %arg11: memref<128x128xbf16, #tpu.memory_space<vmem>>, %arg12: memref<1x128xf32, #tpu.memory_space<vmem>>, %arg13: memref<16x128xf32, #tpu.memory_space<vmem>>, %arg14: memref<16x128xf32, #tpu.memory_space<vmem>>) attributes {dimension_semantics = [#tpu.dimension_semantics<parallel>, #tpu.dimension_semantics<arbitrary>], iteration_bounds = array<i64: 2, 4>, scalar_prefetch = 0 : i64, scratch_operands = 1 : i64, tpu.core_type = #tpu.core_type<tc>, window_params = [{transform_indices = @transform_0, window_bounds = array<i64: 4, 8>}, {transform_indices = @transform_1, window_bounds = array<i64: 16, 256>}, {transform_indices = @transform_2, window_bounds = array<i64: 16, 128>}, {transform_indices = @transform_3, window_bounds = array<i64: 1, 1, 128>}, {pipeline_mode = #tpu.pipeline_mode<synchronous>, transform_indices = @transform_4, window_bounds = array<i64: 256, 256>}, {pipeline_mode = #tpu.pipeline_mode<synchronous>, transform_indices = @transform_5, window_bounds = array<i64: 128, 128>}, {pipeline_mode = #tpu.pipeline_mode<synchronous>, transform_indices = @transform_6, window_bounds = array<i64: 128, 128>}, {pipeline_mode = #tpu.pipeline_mode<synchronous>, transform_indices = @transform_7, window_bounds = array<i64: 128, 128>}, {pipeline_mode = #tpu.pipeline_mode<synchronous>, transform_indices = @transform_8, window_bounds = array<i64: 1, 128>}, {pipeline_mode = #tpu.pipeline_mode<synchronous>, transform_indices = @transform_9, window_bounds = array<i64: 128, 128>}, {pipeline_mode = #tpu.pipeline_mode<synchronous>, transform_indices = @transform_10, window_bounds = array<i64: 1, 128>}, {transform_indices = @transform_11, window_bounds = array<i64: 16, 128>}]} {
    %c0_i32 = arith.constant 0 : i32
    %0 = arith.cmpi eq, %arg1, %c0_i32 : i32
    %1 = arith.extui %0 : i1 to i32
    %c0_i32_0 = arith.constant 0 : i32
    %2 = arith.cmpi ne, %1, %c0_i32_0 : i32
    scf.if %2 {
      %c0_17 = arith.constant 0 : index
      %c0_18 = arith.constant 0 : index
      %46 = vector.load %arg3[%c0_17, %c0_18] : memref<16x256xf32, #tpu.memory_space<vmem>>, vector<16x256xf32>
      %47 = arith.truncf %46 : vector<16x256xf32> to vector<16x256xbf16>
      %c0_19 = arith.constant 0 : index
      %c0_20 = arith.constant 0 : index
      %48 = vector.load %arg6[%c0_19, %c0_20] : memref<256x256xbf16, #tpu.memory_space<vmem>>, vector<256x256xbf16>
      %cst_21 = arith.constant dense<0.000000e+00> : vector<16x256xf32>
      %49 = tpu.matmul %47, %48, %cst_21 {dimension_numbers = #tpu.dot_dimension_numbers<[1], [0], [0], [1], [0, 0, 1, 1], [], []>} : vector<16x256xbf16>, vector<256x256xbf16>, vector<16x256xf32> -> vector<16x256xf32>
      %50 = vector.extract_strided_slice %49 {offsets = [0, 0], sizes = [16, 128], strides = [1, 1]} : vector<16x256xf32> to vector<16x128xf32>
      %51 = vector.extract_strided_slice %49 {offsets = [0, 128], sizes = [16, 128], strides = [1, 1]} : vector<16x256xf32> to vector<16x128xf32>
      %52 = arith.mulf %50, %50 : vector<16x128xf32>
      %53 = arith.mulf %51, %51 : vector<16x128xf32>
      %54 = arith.addf %52, %53 : vector<16x128xf32>
      %cst_22 = arith.constant 9.99999996E-13 : f32
      %55 = vector.broadcast %cst_22 : f32 to vector<16x128xf32>
      %56 = arith.addf %54, %55 : vector<16x128xf32>
      %57 = math.sqrt %56 : vector<16x128xf32>
      %58 = arith.truncf %57 : vector<16x128xf32> to vector<16x128xbf16>
      %c0_23 = arith.constant 0 : index
      %c0_24 = arith.constant 0 : index
      %59 = vector.load %arg7[%c0_23, %c0_24] : memref<128x128xbf16, #tpu.memory_space<vmem>>, vector<128x128xbf16>
      %cst_25 = arith.constant dense<0.000000e+00> : vector<16x128xf32>
      %60 = tpu.matmul %58, %59, %cst_25 {dimension_numbers = #tpu.dot_dimension_numbers<[1], [0], [0], [1], [0, 0, 1, 1], [], []>} : vector<16x128xbf16>, vector<128x128xbf16>, vector<16x128xf32> -> vector<16x128xf32>
      %61 = math.log1p %60 : vector<16x128xf32>
      %cst_26 = arith.constant 2.000000e+00 : f32
      %62 = vector.broadcast %cst_26 : f32 to vector<16x128xf32>
      %63 = arith.subf %61, %62 : vector<16x128xf32>
      %cst_27 = arith.constant 5.000000e-01 : f32
      %64 = vector.broadcast %cst_27 : f32 to vector<16x128xf32>
      %65 = arith.mulf %64, %63 : vector<16x128xf32>
      %c0_28 = arith.constant 0 : index
      %c0_29 = arith.constant 0 : index
      %66 = memref.load %arg2[%c0_28, %c0_29] : memref<4x8xf32, #tpu.memory_space<smem>>
      %67 = vector.broadcast %66 : f32 to vector<16x128xf32>
      %68 = arith.mulf %67, %65 : vector<16x128xf32>
      %c0_30 = arith.constant 0 : index
      %c1 = arith.constant 1 : index
      %69 = memref.load %arg2[%c0_30, %c1] : memref<4x8xf32, #tpu.memory_space<smem>>
      %c0_31 = arith.constant 0 : index
      %c0_32 = arith.constant 0 : index
      %70 = vector.load %arg4[%c0_31, %c0_32] : memref<16x128xf32, #tpu.memory_space<vmem>>, vector<16x128xf32>
      %71 = vector.broadcast %69 : f32 to vector<16x128xf32>
      %72 = arith.mulf %71, %70 : vector<16x128xf32>
      %73 = arith.addf %68, %72 : vector<16x128xf32>
      %c0_33 = arith.constant 0 : index
      %c0_34 = arith.constant 0 : index
      %74 = vector.load %arg14[%c0_33, %c0_34] : memref<16x128xf32, #tpu.memory_space<vmem>>, vector<16x128xf32>
      tpu.vector_store %arg14[%c0_33, %c0_34], %73 {strides = array<i32>} : memref<16x128xf32, #tpu.memory_space<vmem>>, vector<16x128xf32>,
    } else {
    }
    %c0 = arith.constant 0 : index
    %c0_1 = arith.constant 0 : index
    %3 = vector.load %arg14[%c0, %c0_1] : memref<16x128xf32, #tpu.memory_space<vmem>>, vector<16x128xf32>
    %c0_2 = arith.constant 0 : index
    %c0_3 = arith.constant 0 : index
    %c0_4 = arith.constant 0 : index
    %4 = vector.load %arg5[%c0_2, %c0_3, %c0_4] : memref<1x1x128xf32, #tpu.memory_space<vmem>>, vector<1x1x128xf32>
    %5 = vector.shape_cast %4 : vector<1x1x128xf32> to vector<1x128xf32>
    %6 = arith.truncf %3 : vector<16x128xf32> to vector<16x128xbf16>
    %c0_5 = arith.constant 0 : index
    %c0_6 = arith.constant 0 : index
    %7 = vector.load %arg8[%c0_5, %c0_6] : memref<128x128xbf16, #tpu.memory_space<vmem>>, vector<128x128xbf16>
    %cst = arith.constant dense<0.000000e+00> : vector<16x128xf32>
    %8 = tpu.matmul %6, %7, %cst {dimension_numbers = #tpu.dot_dimension_numbers<[1], [0], [0], [1], [0, 0, 1, 1], [], []>} : vector<16x128xbf16>, vector<128x128xbf16>, vector<16x128xf32> -> vector<16x128xf32>
    %9 = vector.broadcast %5 : vector<1x128xf32> to vector<16x128xf32>
    %10 = arith.addf %8, %9 : vector<16x128xf32>
    %cst_7 = arith.constant 0.000000e+00 : f32
    %11 = vector.broadcast %cst_7 : f32 to vector<16x128xf32>
    %12 = arith.subf %11, %10 : vector<16x128xf32>
    %13 = math.exp %12 : vector<16x128xf32>
    %cst_8 = arith.constant 1.000000e+00 : f32
    %14 = vector.broadcast %cst_8 : f32 to vector<16x128xf32>
    %15 = arith.addf %14, %13 : vector<16x128xf32>
    %16 = tpu.reciprocal %15 {approx = true} : vector<16x128xf32> -> vector<16x128xf32>
    %17 = arith.mulf %10, %16 : vector<16x128xf32>
    %18 = arith.truncf %17 : vector<16x128xf32> to vector<16x128xbf16>
    %c0_9 = arith.constant 0 : index
    %c0_10 = arith.constant 0 : index
    %19 = vector.load %arg9[%c0_9, %c0_10] : memref<128x128xbf16, #tpu.memory_space<vmem>>, vector<128x128xbf16>
    %cst_11 = arith.constant dense<0.000000e+00> : vector<16x128xf32>
    %20 = tpu.matmul %18, %19, %cst_11 {dimension_numbers = #tpu.dot_dimension_numbers<[1], [0], [0], [1], [0, 0, 1, 1], [], []>} : vector<16x128xbf16>, vector<128x128xbf16>, vector<16x128xf32> -> vector<16x128xf32>
    %c0_12 = arith.constant 0 : index
    %c0_13 = arith.constant 0 : index
    %21 = vector.load %arg10[%c0_12, %c0_13] : memref<1x128xf32, #tpu.memory_space<vmem>>, vector<1x128xf32>
    %22 = vector.broadcast %21 : vector<1x128xf32> to vector<16x128xf32>
    %23 = arith.addf %20, %22 : vector<16x128xf32>
    %24 = arith.index_cast %arg1 : i32 to index
    %c3 = arith.constant 3 : index
    %25 = memref.load %arg2[%24, %c3] : memref<4x8xf32, #tpu.memory_space<smem>>
    %26 = vector.broadcast %25 : f32 to vector<16x128xf32>
    %27 = arith.mulf %26, %23 : vector<16x128xf32>
    %28 = arith.subf %3, %27 : vector<16x128xf32>
    %29 = arith.index_cast %arg1 : i32 to index
    %c2 = arith.constant 2 : index
    %30 = memref.load %arg2[%29, %c2] : memref<4x8xf32, #tpu.memory_space<smem>>
    %31 = vector.broadcast %30 : f32 to vector<16x128xf32>
    %32 = arith.mulf %28, %31 : vector<16x128xf32>
    %33 = arith.index_cast %arg1 : i32 to index
    %c4 = arith.constant 4 : index
    %34 = memref.load %arg2[%33, %c4] : memref<4x8xf32, #tpu.memory_space<smem>>
    %35 = vector.broadcast %34 : f32 to vector<16x128xf32>
    %36 = arith.mulf %35, %32 : vector<16x128xf32>
    %37 = arith.index_cast %arg1 : i32 to index
    %c5 = arith.constant 5 : index
    %38 = memref.load %arg2[%37, %c5] : memref<4x8xf32, #tpu.memory_space<smem>>
    %39 = vector.broadcast %38 : f32 to vector<16x128xf32>
    %40 = arith.mulf %39, %23 : vector<16x128xf32>
    %41 = arith.addf %36, %40 : vector<16x128xf32>
    %c0_14 = arith.constant 0 : index
    %c0_15 = arith.constant 0 : index
    %42 = vector.load %arg14[%c0_14, %c0_15] : memref<16x128xf32, #tpu.memory_space<vmem>>, vector<16x128xf32>
    tpu.vector_store %arg14[%c0_14, %c0_15], %41 {strides = array<i32>} : memref<16x128xf32, #tpu.memory_space<vmem>>, vector<16x128xf32>,
    %c3_i32 = arith.constant 3 : i32
    %43 = arith.cmpi eq, %arg1, %c3_i32 : i32
    %44 = arith.extui %43 : i1 to i32
    %c0_i32_16 = arith.constant 0 : i32
    %45 = arith.cmpi ne, %44, %c0_i32_16 : i32
    scf.if %45 {
      %46 = arith.truncf %41 : vector<16x128xf32> to vector<16x128xbf16>
      %c0_17 = arith.constant 0 : index
      %c0_18 = arith.constant 0 : index
      %47 = vector.load %arg11[%c0_17, %c0_18] : memref<128x128xbf16, #tpu.memory_space<vmem>>, vector<128x128xbf16>
      %cst_19 = arith.constant dense<0.000000e+00> : vector<16x128xf32>
      %48 = tpu.matmul %46, %47, %cst_19 {dimension_numbers = #tpu.dot_dimension_numbers<[1], [0], [0], [1], [0, 0, 1, 1], [], []>} : vector<16x128xbf16>, vector<128x128xbf16>, vector<16x128xf32> -> vector<16x128xf32>
      %c0_20 = arith.constant 0 : index
      %c0_21 = arith.constant 0 : index
      %49 = vector.load %arg12[%c0_20, %c0_21] : memref<1x128xf32, #tpu.memory_space<vmem>>, vector<1x128xf32>
      %50 = vector.broadcast %49 : vector<1x128xf32> to vector<16x128xf32>
      %51 = arith.addf %48, %50 : vector<16x128xf32>
      %cst_22 = arith.constant 0.000000e+00 : f32
      %52 = vector.broadcast %cst_22 : f32 to vector<16x128xf32>
      %53 = arith.maximumf %51, %52 : vector<16x128xf32>
      %54 = math.absf %51 : vector<16x128xf32>
      %cst_23 = arith.constant 0.000000e+00 : f32
      %55 = vector.broadcast %cst_23 : f32 to vector<16x128xf32>
      %56 = arith.subf %55, %54 : vector<16x128xf32>
      %57 = math.exp %56 : vector<16x128xf32>
      %58 = math.log1p %57 : vector<16x128xf32>
      %59 = arith.addf %53, %58 : vector<16x128xf32>
      %c0_24 = arith.constant 0 : index
      %c0_25 = arith.constant 0 : index
      %60 = vector.load %arg13[%c0_24, %c0_25] : memref<16x128xf32, #tpu.memory_space<vmem>>, vector<16x128xf32>
      tpu.vector_store %arg13[%c0_24, %c0_25], %59 {strides = array<i32>} : memref<16x128xf32, #tpu.memory_space<vmem>>, vector<16x128xf32>,
    } else {
    }
    return
  }
  func.func @transform_0(%arg0: i32, %arg1: i32) -> (i32, i32) {
    %c0_i32 = arith.constant 0 : i32
    %c0_i32_0 = arith.constant 0 : i32
    %c0_i32_1 = arith.constant 0 : i32
    return %c0_i32, %c0_i32_0 : i32, i32
  }
  func.func @transform_1(%arg0: i32, %arg1: i32) -> (i32, i32) {
    %c0_i32 = arith.constant 0 : i32
    %c0_i32_0 = arith.constant 0 : i32
    return %arg0, %c0_i32 : i32, i32
  }
  func.func @transform_2(%arg0: i32, %arg1: i32) -> (i32, i32) {
    %c0_i32 = arith.constant 0 : i32
    %c0_i32_0 = arith.constant 0 : i32
    return %arg0, %c0_i32 : i32, i32
  }
  func.func @transform_3(%arg0: i32, %arg1: i32) -> (i32, i32, i32) {
    %c0_i32 = arith.constant 0 : i32
    %c0_i32_0 = arith.constant 0 : i32
    %c0_i32_1 = arith.constant 0 : i32
    return %arg1, %c0_i32, %c0_i32_0 : i32, i32, i32
  }
  func.func @transform_4(%arg0: i32, %arg1: i32) -> (i32, i32) {
    %c0_i32 = arith.constant 0 : i32
    %c0_i32_0 = arith.constant 0 : i32
    %c0_i32_1 = arith.constant 0 : i32
    return %c0_i32, %c0_i32_0 : i32, i32
  }
  func.func @transform_5(%arg0: i32, %arg1: i32) -> (i32, i32) {
    %c0_i32 = arith.constant 0 : i32
    %c0_i32_0 = arith.constant 0 : i32
    %c0_i32_1 = arith.constant 0 : i32
    return %c0_i32, %c0_i32_0 : i32, i32
  }
  func.func @transform_6(%arg0: i32, %arg1: i32) -> (i32, i32) {
    %c0_i32 = arith.constant 0 : i32
    %c0_i32_0 = arith.constant 0 : i32
    %c0_i32_1 = arith.constant 0 : i32
    return %c0_i32, %c0_i32_0 : i32, i32
  }
  func.func @transform_7(%arg0: i32, %arg1: i32) -> (i32, i32) {
    %c0_i32 = arith.constant 0 : i32
    %c0_i32_0 = arith.constant 0 : i32
    %c0_i32_1 = arith.constant 0 : i32
    return %c0_i32, %c0_i32_0 : i32, i32
  }
  func.func @transform_8(%arg0: i32, %arg1: i32) -> (i32, i32) {
    %c0_i32 = arith.constant 0 : i32
    %c0_i32_0 = arith.constant 0 : i32
    %c0_i32_1 = arith.constant 0 : i32
    return %c0_i32, %c0_i32_0 : i32, i32
  }
  func.func @transform_9(%arg0: i32, %arg1: i32) -> (i32, i32) {
    %c0_i32 = arith.constant 0 : i32
    %c0_i32_0 = arith.constant 0 : i32
    %c0_i32_1 = arith.constant 0 : i32
    return %c0_i32, %c0_i32_0 : i32, i32
  }
  func.func @transform_10(%arg0: i32, %arg1: i32) -> (i32, i32) {
    %c0_i32 = arith.constant 0 : i32
    %c0_i32_0 = arith.constant 0 : i32
    %c0_i32_1 = arith.constant 0 : i32
    return %c0_i32, %c0_i32_0 : i32, i32
  }
  func.func @transform_11(%arg0: i32, %arg1: i32) -> (i32, i32) {
    %c0_i32 = arith.constant 0 : i32
    %c0_i32_0 = arith.constant 0 : i32
    return %arg0, %c0_i32 : i32, i32
  }
}

module attributes {stable_mosaic.version = 11 : i64} {
  func.func @_stft_project_kernel(%arg0: i32, %arg1: memref<16x256xf32, #tpu.memory_space<vmem>>, %arg2: memref<256x256xbf16, #tpu.memory_space<vmem>>, %arg3: memref<16x128xf32, #tpu.memory_space<vmem>>, %arg4: memref<16x256xf32, #tpu.memory_space<vmem>>) attributes {dimension_semantics = [#tpu.dimension_semantics<parallel>], iteration_bounds = array<i64: 2>, scalar_prefetch = 0 : i64, scratch_operands = 0 : i64, tpu.core_type = #tpu.core_type<tc>, window_params = [{transform_indices = @transform_0, window_bounds = array<i64: 16, 256>}, {pipeline_mode = #tpu.pipeline_mode<synchronous>, transform_indices = @transform_1, window_bounds = array<i64: 256, 256>}, {transform_indices = @transform_2, window_bounds = array<i64: 16, 128>}, {transform_indices = @transform_3, window_bounds = array<i64: 16, 256>}]} {
    %c0 = arith.constant 0 : index
    %c0_0 = arith.constant 0 : index
    %0 = vector.load %arg1[%c0, %c0_0] : memref<16x256xf32, #tpu.memory_space<vmem>>, vector<16x256xf32>
    %1 = arith.truncf %0 : vector<16x256xf32> to vector<16x256xbf16>
    %c0_1 = arith.constant 0 : index
    %c0_2 = arith.constant 0 : index
    %2 = vector.load %arg2[%c0_1, %c0_2] : memref<256x256xbf16, #tpu.memory_space<vmem>>, vector<256x256xbf16>
    %cst = arith.constant dense<0.000000e+00> : vector<16x256xf32>
    %3 = tpu.matmul %1, %2, %cst {dimension_numbers = #tpu.dot_dimension_numbers<[1], [0], [0], [1], [0, 0, 1, 1], [], []>} : vector<16x256xbf16>, vector<256x256xbf16>, vector<16x256xf32> -> vector<16x256xf32>
    %4 = vector.extract_strided_slice %3 {offsets = [0, 0], sizes = [16, 128], strides = [1, 1]} : vector<16x256xf32> to vector<16x128xf32>
    %5 = vector.extract_strided_slice %3 {offsets = [0, 128], sizes = [16, 128], strides = [1, 1]} : vector<16x256xf32> to vector<16x128xf32>
    %c0_3 = arith.constant 0 : index
    %c0_4 = arith.constant 0 : index
    %6 = vector.load %arg3[%c0_3, %c0_4] : memref<16x128xf32, #tpu.memory_space<vmem>>, vector<16x128xf32>
    %7 = arith.mulf %4, %4 : vector<16x128xf32>
    %8 = arith.mulf %5, %5 : vector<16x128xf32>
    %9 = arith.addf %7, %8 : vector<16x128xf32>
    %cst_5 = arith.constant 9.99999996E-13 : f32
    %10 = vector.broadcast %cst_5 : f32 to vector<16x128xf32>
    %11 = arith.addf %9, %10 : vector<16x128xf32>
    %12 = math.rsqrt %11 : vector<16x128xf32>
    %13 = arith.mulf %6, %12 : vector<16x128xf32>
    %14 = arith.mulf %4, %13 : vector<16x128xf32>
    %c0_6 = arith.constant 0 : index
    %c0_7 = arith.constant 0 : index
    %15 = vector.load %arg4[%c0_6, %c0_7] : memref<16x256xf32, #tpu.memory_space<vmem>>, vector<16x128xf32>
    tpu.vector_store %arg4[%c0_6, %c0_7], %14 {strides = array<i32>} : memref<16x256xf32, #tpu.memory_space<vmem>>, vector<16x128xf32>,
    %16 = arith.mulf %5, %13 : vector<16x128xf32>
    %c0_8 = arith.constant 0 : index
    %c128 = arith.constant 128 : index
    %17 = vector.load %arg4[%c0_8, %c128] : memref<16x256xf32, #tpu.memory_space<vmem>>, vector<16x128xf32>
    tpu.vector_store %arg4[%c0_8, %c128], %16 {strides = array<i32>} : memref<16x256xf32, #tpu.memory_space<vmem>>, vector<16x128xf32>,
    return
  }
  func.func @transform_0(%arg0: i32) -> (i32, i32) {
    %c0_i32 = arith.constant 0 : i32
    %c0_i32_0 = arith.constant 0 : i32
    return %arg0, %c0_i32 : i32, i32
  }
  func.func @transform_1(%arg0: i32) -> (i32, i32) {
    %c0_i32 = arith.constant 0 : i32
    %c0_i32_0 = arith.constant 0 : i32
    %c0_i32_1 = arith.constant 0 : i32
    return %c0_i32, %c0_i32_0 : i32, i32
  }
  func.func @transform_2(%arg0: i32) -> (i32, i32) {
    %c0_i32 = arith.constant 0 : i32
    %c0_i32_0 = arith.constant 0 : i32
    return %arg0, %c0_i32 : i32, i32
  }
  func.func @transform_3(%arg0: i32) -> (i32, i32) {
    %c0_i32 = arith.constant 0 : i32
    %c0_i32_0 = arith.constant 0 : i32
    return %arg0, %c0_i32 : i32, i32
  }
}

</mosaic_0001>

<llo_original>
// kernel: _impl.8
$region0: #{_impl.8}
  #allocation0 [shape = 'u32[]', space=smem, size = 0x4, offset = 0x4, fixed_abs, tag = 'smem constant byte address 0x4 - core index']
  #allocation1 [shape = 'u32[72,128]{1,0:T(1,128)}', space=vmem, size = 0x9000, scoped, tag = 'internal scratch']
  %s0 = inlined_call_operand.vmem [shape: f32[32,256], index: 0, kind: input, shape index: {}]
  %s1 = inlined_call_operand.vmem [shape: bf16[256,256], index: 1, kind: input, shape index: {}]
  %s2 = inlined_call_operand.vmem [shape: f32[32,128], index: 2, kind: input, shape index: {}]
  %s3 = inlined_call_operand.vmem [shape: f32[32,256], index: 3, kind: output, shape index: {}]
  %s4 = sld [smem:[#allocation0]]
  $region45: #{_impl.8} parent=0
    _
  %s6 = ssub.s32 1, %s4
  %s7 = scalar_select 0, %s6, %s4
  loop: start=0, step=1, limit=4
  $region2: #{_impl.8} parent=0 // loop_pre_header
    _
  $region3: #{_impl.8} parent=0 // loop_header
    %s9 = sphi 0, %s13
    %p10 = scmp.ge.s32.totalorder %s9, 4
    %s19 = sphi 0, %s21
    %s22 = sphi 0, %s19
    %s23 = sphi 0, %s22
    %s39 = sphi 0, %s23
    %s43 = sphi 0, %s43
    %s45 = sphi 0, %s43
    %s46 = sphi 0, %s45
    %s60 = sphi 0, %s46
    %s66 = sphi 0, %s68
    %s69 = sphi 0, %s66
    %s70 = sphi 0, %s69
    %s86 = sphi 0, %s70
    %s92 = sphi 0, %s94
    %s95 = sphi 0, %s92
    %s96 = sphi 0, %s95
    %s112 = sphi 0, %s96
  $region4: #{_impl.8} parent=0 // loop_header_branch
    %12 = sbr.rel (%p10) target = $region8
  $region5: #{_impl.8} parent=0 // loop_body
    %s14 = ssub.s32 %s9, 1
    %s15 = ssub.s32 %s9, 2
    %s16 = sadd.s32 %s9, 1
    %s17 = ssub.s32 %s9, %s16
    %p18 = scmp.eq.s32.totalorder %s17, 0
    %s20 = sadd.s32 %s19, 1
    %s21 = scalar_select %p18, %s19, %s20
    %p24 = pneg %p18
    %p25 = scmp.eq.s32.totalorder %s9, 1
    %p26 = por %p24, %p25
    %p27 = scmp.ne.s32.totalorder %s19, %s22
    %p28 = scmp.eq.s32.totalorder %s9, 0
    %p29 = por %p27, %p28
    %p30 = scmp.ne.s32.totalorder %s19, %s22
    %p31 = scmp.eq.s32.totalorder %s14, 1
    %p32 = por %p30, %p31
    %p33 = scmp.ne.s32.totalorder %s22, %s23
    %p34 = scmp.eq.s32.totalorder %s14, 0
    %p35 = por %p33, %p34
    %p36 = scmp.ne.s32.totalorder %s22, %s23
    %p37 = scmp.eq.s32.totalorder %s15, 1
    %p38 = por %p36, %p37
    %p40 = scmp.ne.s32.totalorder %s23, %s39
    %p41 = scmp.eq.s32.totalorder %s15, 0
    %p42 = por %p40, %p41
    %s44 = sadd.s32 %s43, 1
    %p47 = scmp.eq.s32.totalorder %s9, 1
    %p48 = scmp.ne.s32.totalorder %s43, %s45
    %p49 = scmp.eq.s32.totalorder %s9, 0
    %p50 = por %p48, %p49
    %p51 = scmp.ne.s32.totalorder %s43, %s45
    %p52 = scmp.eq.s32.totalorder %s14, 1
    %p53 = por %p51, %p52
    %p54 = scmp.ne.s32.totalorder %s45, %s46
    %p55 = scmp.eq.s32.totalorder %s14, 0
    %p56 = por %p54, %p55
    %p57 = scmp.ne.s32.totalorder %s45, %s46
    %p58 = scmp.eq.s32.totalorder %s15, 1
    %p59 = por %p57, %p58
    %p61 = scmp.ne.s32.totalorder %s46, %s60
    %p62 = scmp.eq.s32.totalorder %s15, 0
    %p63 = por %p61, %p62
    %s64 = ssub.s32 %s9, %s16
    %p65 = scmp.eq.s32.totalorder %s64, 0
    %s67 = sadd.s32 %s66, 1
    %s68 = scalar_select %p65, %s66, %s67
    %p71 = pneg %p65
    %p72 = scmp.eq.s32.totalorder %s9, 1
    %p73 = por %p71, %p72
    %p74 = scmp.ne.s32.totalorder %s66, %s69
    %p75 = scmp.eq.s32.totalorder %s9, 0
    %p76 = por %p74, %p75
    %p77 = scmp.ne.s32.totalorder %s66, %s69
    %p78 = scmp.eq.s32.totalorder %s14, 1
    %p79 = por %p77, %p78
    %p80 = scmp.ne.s32.totalorder %s69, %s70
    %p81 = scmp.eq.s32.totalorder %s14, 0
    %p82 = por %p80, %p81
    %p83 = scmp.ne.s32.totalorder %s69, %s70
    %p84 = scmp.eq.s32.totalorder %s15, 1
    %p85 = por %p83, %p84
    %p87 = scmp.ne.s32.totalorder %s70, %s86
    %p88 = scmp.eq.s32.totalorder %s15, 0
    %p89 = por %p87, %p88
    %s90 = ssub.s32 %s9, %s16
    %p91 = scmp.eq.s32.totalorder %s90, 0
    %s93 = sadd.s32 %s92, 1
    %s94 = scalar_select %p91, %s92, %s93
    %p97 = pneg %p91
    %p98 = scmp.eq.s32.totalorder %s9, 1
    %p99 = por %p97, %p98
    %p100 = scmp.ne.s32.totalorder %s92, %s95
    %p101 = scmp.eq.s32.totalorder %s9, 0
    %p102 = por %p100, %p101
    %p103 = scmp.ne.s32.totalorder %s92, %s95
    %p104 = scmp.eq.s32.totalorder %s14, 1
    %p105 = por %p103, %p104
    %p106 = scmp.ne.s32.totalorder %s95, %s96
    %p107 = scmp.eq.s32.totalorder %s14, 0
    %p108 = por %p106, %p107
    %p109 = scmp.ne.s32.totalorder %s95, %s96
    %p110 = scmp.eq.s32.totalorder %s15, 1
    %p111 = por %p109, %p110
    %p113 = scmp.ne.s32.totalorder %s96, %s112
    %p114 = scmp.eq.s32.totalorder %s15, 0
    %p115 = por %p113, %p114
    %p116 = scmp.le.s32.totalorder 1, %s9
    %p117 = scmp.lt.s32.totalorder %s9, 3
    %p118 = pnand %p116, %p117
    %p119 = pneg %p118
    // Predicated region
    $region9: #{_impl.8} parent=5 // pred_check
      _
    $region10: #{_impl.8} parent=5 // pred_check_branch
      %121 = sbr.rel (%p118) target = $region12
    $region11: #{_impl.8} parent=5 // pred_region
      %s122 = ssub.s32 %s9, 1
      // Predicated region
      $region13: #{_impl.8} parent=11 // pred_check
        %p123 = pneg %p56
      $region14: #{_impl.8} parent=11 // pred_check_branch
        %125 = sbr.rel (%p123) target = $region16
      $region15: #{_impl.8} parent=11 // pred_region
        _
      $region16: #{_impl.8} parent=11 // pred_fallthru
        _
    $region12: #{_impl.8} parent=5 // pred_fallthru
      _
    %p126 = scmp.lt.s32.totalorder %s9, 2
    // Predicated region
    $region17: #{_impl.8} parent=5 // pred_check
      %p127 = pneg %p126
    $region18: #{_impl.8} parent=5 // pred_check_branch
      %129 = sbr.rel (%p127) target = $region20
    $region19: #{_impl.8} parent=5 // pred_region
      // Predicated region
      $region21: #{_impl.8} parent=19 // pred_check
        %p130 = pneg %p29
      $region22: #{_impl.8} parent=19 // pred_check_branch
        %132 = sbr.rel (%p130) target = $region24
      $region23: #{_impl.8} parent=19 // pred_region
        %s133 = smul.u32 2, %s9
        %p134 = scmp.lt.s32.totalorder %s133, 3
        %s135 = scalar_select %p134, %s133, 3
        %s136 = smul.addr %s135, 2
        %s137 = smul.addr %s136, 8
        %s138 = scalar_lea.vmem %s0, %s137
        %s139 = smul.u32 2, %s9
      $region24: #{_impl.8} parent=19 // pred_fallthru
        _
      // Predicated region
      $region25: #{_impl.8} parent=19 // pred_check
        %p140 = pneg %p76
      $region26: #{_impl.8} parent=19 // pred_check_branch
        %142 = sbr.rel (%p140) target = $region28
      $region27: #{_impl.8} parent=19 // pred_region
        %s143 = smul.u32 2, %s9
        %p144 = scmp.lt.s32.totalorder %s143, 3
        %s145 = scalar_select %p144, %s143, 3
        %s146 = smul.addr %s145, 8
        %s147 = scalar_lea.vmem %s2, %s146
        %s148 = smul.u32 2, %s9
      $region28: #{_impl.8} parent=19 // pred_fallthru
        _
    $region20: #{_impl.8} parent=5 // pred_fallthru
      _
    %p149 = scmp.le.s32.totalorder 1, %s9
    %p150 = scmp.lt.s32.totalorder %s9, 3
    %p151 = pnand %p149, %p150
    %p152 = pneg %p151
    // Predicated region
    $region29: #{_impl.8} parent=5 // pred_check
      _
    $region30: #{_impl.8} parent=5 // pred_check_branch
      %154 = sbr.rel (%p151) target = $region32
    $region31: #{_impl.8} parent=5 // pred_region
      %s155 = ssub.s32 %s9, 1
      %s156 = smul.u32 2, %s14
      %p157 = scmp.lt.s32.totalorder %s156, 3
      %s158 = scalar_select %p157, %s156, 3
      %s159 = smul.addr %s158, 2
      %s160 = smul.addr %s159, 8
      %s161 = scalar_lea.vmem %s0, %s160
      %p162 = pneg %p35
      %p163 = pneg %p32
      %p164 = pneg %p56
      %p165 = pneg %p53
      %s166 = smul.u32 2, %s14
      %p167 = scmp.lt.s32.totalorder %s166, 3
      %s168 = scalar_select %p167, %s166, 3
      %s169 = smul.addr %s168, 8
      %s170 = scalar_lea.vmem %s2, %s169
      %p171 = pneg %p82
      %p172 = pneg %p79
      %p173 = pneg %p108
      %p174 = pneg %p105
      %s175 = smul.u32 2, %s14
      %p176 = scmp.lt.s32.totalorder %s175, 3
      %s177 = scalar_select %p176, %s175, 3
      %s178 = smul.addr %s177, 2
      %s179 = smul.addr %s178, 8
      %s180 = scalar_lea.vmem %s3, %s179
      %s181 = smul.u32 2, %s14
      %p182 = scmp.lt.s32.totalorder %s181, 3
      %s183 = scalar_select %p182, %s181, 3
      %s184 = smul.addr %s183, 2
      %s185 = smul.addr %s184, 8
      %s186 = scalar_lea.vmem %s0, %s185
      %s187 = smul.u32 2, %s14
      %s188 = smul.u32 2, %s14
      %p189 = scmp.lt.s32.totalorder %s188, 3
      %s190 = scalar_select %p189, %s188, 3
      %s191 = smul.addr %s190, 8
      %s192 = scalar_lea.vmem %s2, %s191
      %s193 = smul.u32 2, %s14
      %s194 = smul.u32 2, %s14
      %p195 = scmp.lt.s32.totalorder %s194, 3
      %s196 = scalar_select %p195, %s194, 3
      %s197 = smul.addr %s196, 2
      %s198 = smul.addr %s197, 8
      %s199 = scalar_lea.vmem %s3, %s198
      %s200 = smul.u32 2, %s14
      %v201 = vld [vmem:[%s186] sm:$0xff]
      %v202 = vld [vmem:[%s186 + $0x8] sm:$0xff]
      %v203 = vld [vmem:[%s186 + $0x10] sm:$0xff]
      %v204 = vld [vmem:[%s186 + $0x18] sm:$0xff]
      %v205 = vpack.c.bf16 %v203, %v201
      %v206 = vpack.c.bf16 %v204, %v202
      %v207 = vld [vmem:[%s1] sm:$0xff]
      %v208 = vld [vmem:[%s1 + $0x8] sm:$0xff]
      %v209 = vld [vmem:[%s1 + $0x10] sm:$0xff]
      %v210 = vld [vmem:[%s1 + $0x18] sm:$0xff]
      %v211 = vld [vmem:[%s1 + $0x20] sm:$0xff]
      %v212 = vld [vmem:[%s1 + $0x28] sm:$0xff]
      %v213 = vld [vmem:[%s1 + $0x30] sm:$0xff]
      %v214 = vld [vmem:[%s1 + $0x38] sm:$0xff]
      %v215 = vld [vmem:[%s1 + $0x40] sm:$0xff]
      %v216 = vld [vmem:[%s1 + $0x48] sm:$0xff]
      %v217 = vld [vmem:[%s1 + $0x50] sm:$0xff]
      %v218 = vld [vmem:[%s1 + $0x58] sm:$0xff]
      %v219 = vld [vmem:[%s1 + $0x60] sm:$0xff]
      %v220 = vld [vmem:[%s1 + $0x68] sm:$0xff]
      %v221 = vld [vmem:[%s1 + $0x70] sm:$0xff]
      %v222 = vld [vmem:[%s1 + $0x78] sm:$0xff]
      %v223 = vld [vmem:[%s1 + $0x80] sm:$0xff]
      %v224 = vld [vmem:[%s1 + $0x88] sm:$0xff]
      %v225 = vld [vmem:[%s1 + $0x90] sm:$0xff]
      %v226 = vld [vmem:[%s1 + $0x98] sm:$0xff]
      %v227 = vld [vmem:[%s1 + $0xa0] sm:$0xff]
      %v228 = vld [vmem:[%s1 + $0xa8] sm:$0xff]
      %v229 = vld [vmem:[%s1 + $0xb0] sm:$0xff]
      %v230 = vld [vmem:[%s1 + $0xb8] sm:$0xff]
      %v231 = vld [vmem:[%s1 + $0xc0] sm:$0xff]
      %v232 = vld [vmem:[%s1 + $0xc8] sm:$0xff]
      %v233 = vld [vmem:[%s1 + $0xd0] sm:$0xff]
      %v234 = vld [vmem:[%s1 + $0xd8] sm:$0xff]
      %v235 = vld [vmem:[%s1 + $0xe0] sm:$0xff]
      %v236 = vld [vmem:[%s1 + $0xe8] sm:$0xff]
      %v237 = vld [vmem:[%s1 + $0xf0] sm:$0xff]
      %v238 = vld [vmem:[%s1 + $0xf8] sm:$0xff]
      %v271 = vunpack.c.l.b16 %v207
      %v272 = vunpack.c.h.b16 %v207
      %v273 = vunpack.c.l.b16 %v208
      %v274 = vunpack.c.h.b16 %v208
      %v275 = vunpack.c.l.b16 %v209
      %v276 = vunpack.c.h.b16 %v209
      %v277 = vunpack.c.l.b16 %v210
      %v278 = vunpack.c.h.b16 %v210
      %v279 = vunpack.c.l.b16 %v211
      %v280 = vunpack.c.h.b16 %v211
      %v281 = vunpack.c.l.b16 %v212
      %v282 = vunpack.c.h.b16 %v212
      %v283 = vunpack.c.l.b16 %v213
      %v284 = vunpack.c.h.b16 %v213
      %v285 = vunpack.c.l.b16 %v214
      %v286 = vunpack.c.h.b16 %v214
      %v287 = vunpack.c.l.b16 %v215
      %v288 = vunpack.c.h.b16 %v215
      %v289 = vunpack.c.l.b16 %v216
      %v290 = vunpack.c.h.b16 %v216
      %v291 = vunpack.c.l.b16 %v217
      %v292 = vunpack.c.h.b16 %v217
      %v293 = vunpack.c.l.b16 %v218
      %v294 = vunpack.c.h.b16 %v218
      %v295 = vunpack.c.l.b16 %v219
      %v296 = vunpack.c.h.b16 %v219
      %v297 = vunpack.c.l.b16 %v220
      %v298 = vunpack.c.h.b16 %v220
      %v299 = vunpack.c.l.b16 %v221
      %v300 = vunpack.c.h.b16 %v221
      %v301 = vunpack.c.l.b16 %v222
      %v302 = vunpack.c.h.b16 %v222
      %v303 = vunpack.c.l.b16 %v223
      %v304 = vunpack.c.h.b16 %v223
      %v305 = vunpack.c.l.b16 %v224
      %v306 = vunpack.c.h.b16 %v224
      %v307 = vunpack.c.l.b16 %v225
      %v308 = vunpack.c.h.b16 %v225
      %v309 = vunpack.c.l.b16 %v226
      %v310 = vunpack.c.h.b16 %v226
      %v311 = vunpack.c.l.b16 %v227
      %v312 = vunpack.c.h.b16 %v227
      %v313 = vunpack.c.l.b16 %v228
      %v314 = vunpack.c.h.b16 %v228
      %v315 = vunpack.c.l.b16 %v229
      %v316 = vunpack.c.h.b16 %v229
      %v317 = vunpack.c.l.b16 %v230
      %v318 = vunpack.c.h.b16 %v230
      %v319 = vunpack.c.l.b16 %v231
      %v320 = vunpack.c.h.b16 %v231
      %v321 = vunpack.c.l.b16 %v232
      %v322 = vunpack.c.h.b16 %v232
      %v323 = vunpack.c.l.b16 %v233
      %v324 = vunpack.c.h.b16 %v233
      %v325 = vunpack.c.l.b16 %v234
      %v326 = vunpack.c.h.b16 %v234
      %v327 = vunpack.c.l.b16 %v235
      %v328 = vunpack.c.h.b16 %v235
      %v329 = vunpack.c.l.b16 %v236
      %v330 = vunpack.c.h.b16 %v236
      %v331 = vunpack.c.l.b16 %v237
      %v332 = vunpack.c.h.b16 %v237
      %v333 = vunpack.c.l.b16 %v238
      %v334 = vunpack.c.h.b16 %v238
      %v335 = vpack.c.b16 %v273, %v271
      %v336 = vpack.c.b16 %v274, %v272
      %v337 = vpack.c.b16 %v277, %v275
      %v338 = vpack.c.b16 %v278, %v276
      %v339 = vpack.c.b16 %v281, %v279
      %v340 = vpack.c.b16 %v282, %v280
      %v341 = vpack.c.b16 %v285, %v283
      %v342 = vpack.c.b16 %v286, %v284
      %v343 = vpack.c.b16 %v289, %v287
      %v344 = vpack.c.b16 %v290, %v288
      %v345 = vpack.c.b16 %v293, %v291
      %v346 = vpack.c.b16 %v294, %v292
      %v347 = vpack.c.b16 %v297, %v295
      %v348 = vpack.c.b16 %v298, %v296
      %v349 = vpack.c.b16 %v301, %v299
      %v350 = vpack.c.b16 %v302, %v300
      %v351 = vpack.c.b16 %v305, %v303
      %v352 = vpack.c.b16 %v306, %v304
      %v353 = vpack.c.b16 %v309, %v307
      %v354 = vpack.c.b16 %v310, %v308
      %v355 = vpack.c.b16 %v313, %v311
      %v356 = vpack.c.b16 %v314, %v312
      %v357 = vpack.c.b16 %v317, %v315
      %v358 = vpack.c.b16 %v318, %v316
      %v359 = vpack.c.b16 %v321, %v319
      %v360 = vpack.c.b16 %v322, %v320
      %v361 = vpack.c.b16 %v325, %v323
      %v362 = vpack.c.b16 %v326, %v324
      %v363 = vpack.c.b16 %v329, %v327
      %v364 = vpack.c.b16 %v330, %v328
      %v365 = vpack.c.b16 %v333, %v331
      %v366 = vpack.c.b16 %v334, %v332
      %399 = vmatpush.bf16.msra.mxu0 %v349
      %400 = vmatpush.bf16.msra.mxu0 %v347
      %401 = vmatpush.bf16.msra.mxu0 %v345
      %402 = vmatpush.bf16.msra.mxu0 %v343
      %403 = vmatpush.bf16.msra.mxu0 %v341
      %404 = vmatpush.bf16.msra.mxu0 %v339
      %405 = vmatpush.bf16.msra.mxu0 %v337
      %406 = vmatpush.bf16.msra.mxu0 %v335
      %407 = vmatmul.bf16.gmra.mxu0 %v205
      %v408 = vpop.f32.mrf.mxu0
      %v409 = vadd.f32 0.0, %v408
      %v410 = vpop.f32.mrf.mxu0
      %v411 = vadd.f32 0.0, %v410
      %412 = vdwg.mxu0
      %413 = vmatpush.bf16.msra.mxu0 %v365
      %414 = vmatpush.bf16.msra.mxu0 %v363
      %415 = vmatpush.bf16.msra.mxu0 %v361
      %416 = vmatpush.bf16.msra.mxu0 %v359
      %417 = vmatpush.bf16.msra.mxu0 %v357
      %418 = vmatpush.bf16.msra.mxu0 %v355
      %419 = vmatpush.bf16.msra.mxu0 %v353
      %420 = vmatpush.bf16.msra.mxu0 %v351
      %421 = vmatmul.bf16.gmra.mxu0 %v206
      %v422 = vpop.f32.mrf.mxu0
      %v423 = vadd.f32 %v409, %v422
      %v424 = vpop.f32.mrf.mxu0
      %v425 = vadd.f32 %v411, %v424
      %426 = vdwg.mxu0
      %427 = vmatpush.bf16.msra.mxu0 %v350
      %428 = vmatpush.bf16.msra.mxu0 %v348
      %429 = vmatpush.bf16.msra.mxu0 %v346
      %430 = vmatpush.bf16.msra.mxu0 %v344
      %431 = vmatpush.bf16.msra.mxu0 %v342
      %432 = vmatpush.bf16.msra.mxu0 %v340
      %433 = vmatpush.bf16.msra.mxu0 %v338
      %434 = vmatpush.bf16.msra.mxu0 %v336
      %435 = vmatmul.bf16.gmra.mxu0 %v205
      %v436 = vpop.f32.mrf.mxu0
      %v437 = vadd.f32 0.0, %v436
      %v438 = vpop.f32.mrf.mxu0
      %v439 = vadd.f32 0.0, %v438
      %440 = vdwg.mxu0
      %441 = vmatpush.bf16.msra.mxu0 %v366
      %442 = vmatpush.bf16.msra.mxu0 %v364
      %443 = vmatpush.bf16.msra.mxu0 %v362
      %444 = vmatpush.bf16.msra.mxu0 %v360
      %445 = vmatpush.bf16.msra.mxu0 %v358
      %446 = vmatpush.bf16.msra.mxu0 %v356
      %447 = vmatpush.bf16.msra.mxu0 %v354
      %448 = vmatpush.bf16.msra.mxu0 %v352
      %449 = vmatmul.bf16.gmra.mxu0 %v206
      %v450 = vpop.f32.mrf.mxu0
      %v451 = vadd.f32 %v437, %v450
      %v452 = vpop.f32.mrf.mxu0
      %v453 = vadd.f32 %v439, %v452
      %454 = vdwg.mxu0
      %v455 = vld [vmem:[%s192] sm:$0xff]
      %v456 = vld [vmem:[%s192 + $0x8] sm:$0xff]
      %v457 = vmul.f32 %v423, %v423
      %v458 = vmul.f32 %v425, %v425
      %v459 = vmul.f32 %v451, %v451
      %v460 = vmul.f32 %v453, %v453
      %v461 = vadd.f32 %v457, %v459
      %v462 = vadd.f32 %v458, %v460
      %v463 = vadd.f32 %v461, 1e-12
      %v464 = vadd.f32 %v462, 1e-12
      %v465 = vrsqrt.pop %v463
      %v466 = vmul.f32 %v465, %v463
      %v467 = vmul.f32 %v466, %v465
      %v468 = vmul.f32 0.5, %v467
      %v469 = vsub.f32 1.5, %v468
      %v470 = vmul.f32 %v465, %v469
      %vm471 = vweird.f32 %v463
      %vm472 = vweird.f32 %v465
      %vm473 = vmor %vm471, %vm472
      %v474 = vsel %vm473, %v465, %v470
      %v475 = vrsqrt.pop %v464
      %v476 = vmul.f32 %v475, %v464
      %v477 = vmul.f32 %v476, %v475
      %v478 = vmul.f32 0.5, %v477
      %v479 = vsub.f32 1.5, %v478
      %v480 = vmul.f32 %v475, %v479
      %vm481 = vweird.f32 %v464
      %vm482 = vweird.f32 %v475
      %vm483 = vmor %vm481, %vm482
      %v484 = vsel %vm483, %v475, %v480
      %v485 = vmul.f32 %v455, %v474
      %v486 = vmul.f32 %v456, %v484
      %v487 = vmul.f32 %v423, %v485
      %v488 = vmul.f32 %v425, %v486
      %489 = vst [vmem:[%s199] sm:$0xff] %v487
      %490 = vst [vmem:[%s199 + $0x10] sm:$0xff] %v488
      %v491 = vmul.f32 %v451, %v485
      %v492 = vmul.f32 %v453, %v486
      %493 = vst [vmem:[%s199 + $0x8] sm:$0xff] %v491
      %494 = vst [vmem:[%s199 + $0x18] sm:$0xff] %v492
      %s495 = smul.u32 2, %s14
      %p496 = scmp.lt.s32.totalorder %s495, 3
      %s497 = scalar_select %p496, %s495, 3
      %s498 = smul.addr %s497, 2
      %s499 = smul.addr %s498, 8
      %s500 = scalar_lea.vmem %s3, %s499
      // Predicated region
      $region33: #{_impl.8} parent=31 // pred_check
        %p501 = pneg %p105
      $region34: #{_impl.8} parent=31 // pred_check_branch
        %503 = sbr.rel (%p501) target = $region36
      $region35: #{_impl.8} parent=31 // pred_region
        %s504 = smul.u32 2, %s14
      $region36: #{_impl.8} parent=31 // pred_fallthru
        _
    $region32: #{_impl.8} parent=5 // pred_fallthru
      _
    %p505 = scmp.le.s32.totalorder 2, %s9
    // Predicated region
    $region37: #{_impl.8} parent=5 // pred_check
      %p506 = pneg %p505
    $region38: #{_impl.8} parent=5 // pred_check_branch
      %508 = sbr.rel (%p506) target = $region40
    $region39: #{_impl.8} parent=5 // pred_region
      %s509 = ssub.s32 %s9, 2
      // Predicated region
      $region41: #{_impl.8} parent=39 // pred_check
        %p510 = pneg %p111
      $region42: #{_impl.8} parent=39 // pred_check_branch
        %512 = sbr.rel (%p510) target = $region44
      $region43: #{_impl.8} parent=39 // pred_region
        %s513 = smul.u32 2, %s15
        %p514 = scmp.lt.s32.totalorder %s513, 3
        %s515 = scalar_select %p514, %s513, 3
        %s516 = smul.addr %s515, 2
        %s517 = smul.addr %s516, 8
        %s518 = scalar_lea.vmem %s3, %s517
      $region44: #{_impl.8} parent=39 // pred_fallthru
        _
    $region40: #{_impl.8} parent=5 // pred_fallthru
      _
  $region6: #{_impl.8} parent=0 // loop_footer
    %s13 = sadd.s32 1, %s9
  $region7: #{_impl.8} parent=0 // loop_footer_branch
    %8 = sbr.rel target = $region3
  $region8: #{_impl.8} parent=0 // loop_exit
    _

// kernel: _impl.7
$region0: #{_impl.7}
  #allocation0 [shape = 'u32[]', space=smem, size = 0x4, offset = 0x4, fixed_abs, tag = 'smem constant byte address 0x4 - core index']
  #allocation1 [shape = 'u32[72,128]{1,0:T(1,128)}', space=vmem, size = 0x9000, scoped, tag = 'internal scratch']
  %s0 = inlined_call_operand.vmem [shape: f32[32,256], index: 0, kind: input, shape index: {}]
  %s1 = inlined_call_operand.vmem [shape: bf16[256,256], index: 1, kind: input, shape index: {}]
  %s2 = inlined_call_operand.vmem [shape: f32[32,256], index: 2, kind: output, shape index: {}]
  %s3 = sld [smem:[#allocation0]]
  $region41: #{_impl.7} parent=0
    _
  %s5 = ssub.s32 1, %s3
  %s6 = scalar_select 0, %s5, %s3
  loop: start=0, step=1, limit=4
  $region2: #{_impl.7} parent=0 // loop_pre_header
    _
  $region3: #{_impl.7} parent=0 // loop_header
    %s8 = sphi 0, %s12
    %p9 = scmp.ge.s32.totalorder %s8, 4
    %s18 = sphi 0, %s20
    %s21 = sphi 0, %s18
    %s22 = sphi 0, %s21
    %s38 = sphi 0, %s22
    %s42 = sphi 0, %s42
    %s44 = sphi 0, %s42
    %s45 = sphi 0, %s44
    %s59 = sphi 0, %s45
    %s65 = sphi 0, %s67
    %s68 = sphi 0, %s65
    %s69 = sphi 0, %s68
    %s85 = sphi 0, %s69
  $region4: #{_impl.7} parent=0 // loop_header_branch
    %11 = sbr.rel (%p9) target = $region8
  $region5: #{_impl.7} parent=0 // loop_body
    %s13 = ssub.s32 %s8, 1
    %s14 = ssub.s32 %s8, 2
    %s15 = sadd.s32 %s8, 1
    %s16 = ssub.s32 %s8, %s15
    %p17 = scmp.eq.s32.totalorder %s16, 0
    %s19 = sadd.s32 %s18, 1
    %s20 = scalar_select %p17, %s18, %s19
    %p23 = pneg %p17
    %p24 = scmp.eq.s32.totalorder %s8, 1
    %p25 = por %p23, %p24
    %p26 = scmp.ne.s32.totalorder %s18, %s21
    %p27 = scmp.eq.s32.totalorder %s8, 0
    %p28 = por %p26, %p27
    %p29 = scmp.ne.s32.totalorder %s18, %s21
    %p30 = scmp.eq.s32.totalorder %s13, 1
    %p31 = por %p29, %p30
    %p32 = scmp.ne.s32.totalorder %s21, %s22
    %p33 = scmp.eq.s32.totalorder %s13, 0
    %p34 = por %p32, %p33
    %p35 = scmp.ne.s32.totalorder %s21, %s22
    %p36 = scmp.eq.s32.totalorder %s14, 1
    %p37 = por %p35, %p36
    %p39 = scmp.ne.s32.totalorder %s22, %s38
    %p40 = scmp.eq.s32.totalorder %s14, 0
    %p41 = por %p39, %p40
    %s43 = sadd.s32 %s42, 1
    %p46 = scmp.eq.s32.totalorder %s8, 1
    %p47 = scmp.ne.s32.totalorder %s42, %s44
    %p48 = scmp.eq.s32.totalorder %s8, 0
    %p49 = por %p47, %p48
    %p50 = scmp.ne.s32.totalorder %s42, %s44
    %p51 = scmp.eq.s32.totalorder %s13, 1
    %p52 = por %p50, %p51
    %p53 = scmp.ne.s32.totalorder %s44, %s45
    %p54 = scmp.eq.s32.totalorder %s13, 0
    %p55 = por %p53, %p54
    %p56 = scmp.ne.s32.totalorder %s44, %s45
    %p57 = scmp.eq.s32.totalorder %s14, 1
    %p58 = por %p56, %p57
    %p60 = scmp.ne.s32.totalorder %s45, %s59
    %p61 = scmp.eq.s32.totalorder %s14, 0
    %p62 = por %p60, %p61
    %s63 = ssub.s32 %s8, %s15
    %p64 = scmp.eq.s32.totalorder %s63, 0
    %s66 = sadd.s32 %s65, 1
    %s67 = scalar_select %p64, %s65, %s66
    %p70 = pneg %p64
    %p71 = scmp.eq.s32.totalorder %s8, 1
    %p72 = por %p70, %p71
    %p73 = scmp.ne.s32.totalorder %s65, %s68
    %p74 = scmp.eq.s32.totalorder %s8, 0
    %p75 = por %p73, %p74
    %p76 = scmp.ne.s32.totalorder %s65, %s68
    %p77 = scmp.eq.s32.totalorder %s13, 1
    %p78 = por %p76, %p77
    %p79 = scmp.ne.s32.totalorder %s68, %s69
    %p80 = scmp.eq.s32.totalorder %s13, 0
    %p81 = por %p79, %p80
    %p82 = scmp.ne.s32.totalorder %s68, %s69
    %p83 = scmp.eq.s32.totalorder %s14, 1
    %p84 = por %p82, %p83
    %p86 = scmp.ne.s32.totalorder %s69, %s85
    %p87 = scmp.eq.s32.totalorder %s14, 0
    %p88 = por %p86, %p87
    %p89 = scmp.le.s32.totalorder 1, %s8
    %p90 = scmp.lt.s32.totalorder %s8, 3
    %p91 = pnand %p89, %p90
    %p92 = pneg %p91
    // Predicated region
    $region9: #{_impl.7} parent=5 // pred_check
      _
    $region10: #{_impl.7} parent=5 // pred_check_branch
      %94 = sbr.rel (%p91) target = $region12
    $region11: #{_impl.7} parent=5 // pred_region
      %s95 = ssub.s32 %s8, 1
      // Predicated region
      $region13: #{_impl.7} parent=11 // pred_check
        %p96 = pneg %p55
      $region14: #{_impl.7} parent=11 // pred_check_branch
        %98 = sbr.rel (%p96) target = $region16
      $region15: #{_impl.7} parent=11 // pred_region
        _
      $region16: #{_impl.7} parent=11 // pred_fallthru
        _
    $region12: #{_impl.7} parent=5 // pred_fallthru
      _
    %p99 = scmp.lt.s32.totalorder %s8, 2
    // Predicated region
    $region17: #{_impl.7} parent=5 // pred_check
      %p100 = pneg %p99
    $region18: #{_impl.7} parent=5 // pred_check_branch
      %102 = sbr.rel (%p100) target = $region20
    $region19: #{_impl.7} parent=5 // pred_region
      // Predicated region
      $region21: #{_impl.7} parent=19 // pred_check
        %p103 = pneg %p28
      $region22: #{_impl.7} parent=19 // pred_check_branch
        %105 = sbr.rel (%p103) target = $region24
      $region23: #{_impl.7} parent=19 // pred_region
        %s106 = smul.u32 2, %s8
        %p107 = scmp.lt.s32.totalorder %s106, 3
        %s108 = scalar_select %p107, %s106, 3
        %s109 = smul.addr %s108, 2
        %s110 = smul.addr %s109, 8
        %s111 = scalar_lea.vmem %s0, %s110
        %s112 = smul.u32 2, %s8
      $region24: #{_impl.7} parent=19 // pred_fallthru
        _
    $region20: #{_impl.7} parent=5 // pred_fallthru
      _
    %p113 = scmp.le.s32.totalorder 1, %s8
    %p114 = scmp.lt.s32.totalorder %s8, 3
    %p115 = pnand %p113, %p114
    %p116 = pneg %p115
    // Predicated region
    $region25: #{_impl.7} parent=5 // pred_check
      _
    $region26: #{_impl.7} parent=5 // pred_check_branch
      %118 = sbr.rel (%p115) target = $region28
    $region27: #{_impl.7} parent=5 // pred_region
      %s119 = ssub.s32 %s8, 1
      %s120 = smul.u32 2, %s13
      %p121 = scmp.lt.s32.totalorder %s120, 3
      %s122 = scalar_select %p121, %s120, 3
      %s123 = smul.addr %s122, 2
      %s124 = smul.addr %s123, 8
      %s125 = scalar_lea.vmem %s0, %s124
      %p126 = pneg %p34
      %p127 = pneg %p31
      %p128 = pneg %p55
      %p129 = pneg %p52
      %p130 = pneg %p81
      %p131 = pneg %p78
      %s132 = smul.u32 2, %s13
      %p133 = scmp.lt.s32.totalorder %s132, 3
      %s134 = scalar_select %p133, %s132, 3
      %s135 = smul.addr %s134, 2
      %s136 = smul.addr %s135, 8
      %s137 = scalar_lea.vmem %s2, %s136
      %s138 = smul.u32 2, %s13
      %p139 = scmp.lt.s32.totalorder %s138, 3
      %s140 = scalar_select %p139, %s138, 3
      %s141 = smul.addr %s140, 2
      %s142 = smul.addr %s141, 8
      %s143 = scalar_lea.vmem %s0, %s142
      %s144 = smul.u32 2, %s13
      %s145 = smul.u32 2, %s13
      %p146 = scmp.lt.s32.totalorder %s145, 3
      %s147 = scalar_select %p146, %s145, 3
      %s148 = smul.addr %s147, 2
      %s149 = smul.addr %s148, 8
      %s150 = scalar_lea.vmem %s2, %s149
      %s151 = smul.u32 2, %s13
      %v152 = vld [vmem:[%s143] sm:$0xff]
      %v153 = vld [vmem:[%s143 + $0x8] sm:$0xff]
      %v154 = vld [vmem:[%s143 + $0x10] sm:$0xff]
      %v155 = vld [vmem:[%s143 + $0x18] sm:$0xff]
      %v156 = vpack.c.bf16 %v154, %v152
      %v157 = vpack.c.bf16 %v155, %v153
      %v158 = vld [vmem:[%s1] sm:$0xff]
      %v159 = vld [vmem:[%s1 + $0x8] sm:$0xff]
      %v160 = vld [vmem:[%s1 + $0x10] sm:$0xff]
      %v161 = vld [vmem:[%s1 + $0x18] sm:$0xff]
      %v162 = vld [vmem:[%s1 + $0x20] sm:$0xff]
      %v163 = vld [vmem:[%s1 + $0x28] sm:$0xff]
      %v164 = vld [vmem:[%s1 + $0x30] sm:$0xff]
      %v165 = vld [vmem:[%s1 + $0x38] sm:$0xff]
      %v166 = vld [vmem:[%s1 + $0x40] sm:$0xff]
      %v167 = vld [vmem:[%s1 + $0x48] sm:$0xff]
      %v168 = vld [vmem:[%s1 + $0x50] sm:$0xff]
      %v169 = vld [vmem:[%s1 + $0x58] sm:$0xff]
      %v170 = vld [vmem:[%s1 + $0x60] sm:$0xff]
      %v171 = vld [vmem:[%s1 + $0x68] sm:$0xff]
      %v172 = vld [vmem:[%s1 + $0x70] sm:$0xff]
      %v173 = vld [vmem:[%s1 + $0x78] sm:$0xff]
      %v174 = vld [vmem:[%s1 + $0x80] sm:$0xff]
      %v175 = vld [vmem:[%s1 + $0x88] sm:$0xff]
      %v176 = vld [vmem:[%s1 + $0x90] sm:$0xff]
      %v177 = vld [vmem:[%s1 + $0x98] sm:$0xff]
      %v178 = vld [vmem:[%s1 + $0xa0] sm:$0xff]
      %v179 = vld [vmem:[%s1 + $0xa8] sm:$0xff]
      %v180 = vld [vmem:[%s1 + $0xb0] sm:$0xff]
      %v181 = vld [vmem:[%s1 + $0xb8] sm:$0xff]
      %v182 = vld [vmem:[%s1 + $0xc0] sm:$0xff]
      %v183 = vld [vmem:[%s1 + $0xc8] sm:$0xff]
      %v184 = vld [vmem:[%s1 + $0xd0] sm:$0xff]
      %v185 = vld [vmem:[%s1 + $0xd8] sm:$0xff]
      %v186 = vld [vmem:[%s1 + $0xe0] sm:$0xff]
      %v187 = vld [vmem:[%s1 + $0xe8] sm:$0xff]
      %v188 = vld [vmem:[%s1 + $0xf0] sm:$0xff]
      %v189 = vld [vmem:[%s1 + $0xf8] sm:$0xff]
      %v222 = vunpack.c.l.b16 %v158
      %v223 = vunpack.c.h.b16 %v158
      %v224 = vunpack.c.l.b16 %v159
      %v225 = vunpack.c.h.b16 %v159
      %v226 = vunpack.c.l.b16 %v160
      %v227 = vunpack.c.h.b16 %v160
      %v228 = vunpack.c.l.b16 %v161
      %v229 = vunpack.c.h.b16 %v161
      %v230 = vunpack.c.l.b16 %v162
      %v231 = vunpack.c.h.b16 %v162
      %v232 = vunpack.c.l.b16 %v163
      %v233 = vunpack.c.h.b16 %v163
      %v234 = vunpack.c.l.b16 %v164
      %v235 = vunpack.c.h.b16 %v164
      %v236 = vunpack.c.l.b16 %v165
      %v237 = vunpack.c.h.b16 %v165
      %v238 = vunpack.c.l.b16 %v166
      %v239 = vunpack.c.h.b16 %v166
      %v240 = vunpack.c.l.b16 %v167
      %v241 = vunpack.c.h.b16 %v167
      %v242 = vunpack.c.l.b16 %v168
      %v243 = vunpack.c.h.b16 %v168
      %v244 = vunpack.c.l.b16 %v169
      %v245 = vunpack.c.h.b16 %v169
      %v246 = vunpack.c.l.b16 %v170
      %v247 = vunpack.c.h.b16 %v170
      %v248 = vunpack.c.l.b16 %v171
      %v249 = vunpack.c.h.b16 %v171
      %v250 = vunpack.c.l.b16 %v172
      %v251 = vunpack.c.h.b16 %v172
      %v252 = vunpack.c.l.b16 %v173
      %v253 = vunpack.c.h.b16 %v173
      %v254 = vunpack.c.l.b16 %v174
      %v255 = vunpack.c.h.b16 %v174
      %v256 = vunpack.c.l.b16 %v175
      %v257 = vunpack.c.h.b16 %v175
      %v258 = vunpack.c.l.b16 %v176
      %v259 = vunpack.c.h.b16 %v176
      %v260 = vunpack.c.l.b16 %v177
      %v261 = vunpack.c.h.b16 %v177
      %v262 = vunpack.c.l.b16 %v178
      %v263 = vunpack.c.h.b16 %v178
      %v264 = vunpack.c.l.b16 %v179
      %v265 = vunpack.c.h.b16 %v179
      %v266 = vunpack.c.l.b16 %v180
      %v267 = vunpack.c.h.b16 %v180
      %v268 = vunpack.c.l.b16 %v181
      %v269 = vunpack.c.h.b16 %v181
      %v270 = vunpack.c.l.b16 %v182
      %v271 = vunpack.c.h.b16 %v182
      %v272 = vunpack.c.l.b16 %v183
      %v273 = vunpack.c.h.b16 %v183
      %v274 = vunpack.c.l.b16 %v184
      %v275 = vunpack.c.h.b16 %v184
      %v276 = vunpack.c.l.b16 %v185
      %v277 = vunpack.c.h.b16 %v185
      %v278 = vunpack.c.l.b16 %v186
      %v279 = vunpack.c.h.b16 %v186
      %v280 = vunpack.c.l.b16 %v187
      %v281 = vunpack.c.h.b16 %v187
      %v282 = vunpack.c.l.b16 %v188
      %v283 = vunpack.c.h.b16 %v188
      %v284 = vunpack.c.l.b16 %v189
      %v285 = vunpack.c.h.b16 %v189
      %v286 = vpack.c.b16 %v224, %v222
      %v287 = vpack.c.b16 %v225, %v223
      %v288 = vpack.c.b16 %v228, %v226
      %v289 = vpack.c.b16 %v229, %v227
      %v290 = vpack.c.b16 %v232, %v230
      %v291 = vpack.c.b16 %v233, %v231
      %v292 = vpack.c.b16 %v236, %v234
      %v293 = vpack.c.b16 %v237, %v235
      %v294 = vpack.c.b16 %v240, %v238
      %v295 = vpack.c.b16 %v241, %v239
      %v296 = vpack.c.b16 %v244, %v242
      %v297 = vpack.c.b16 %v245, %v243
      %v298 = vpack.c.b16 %v248, %v246
      %v299 = vpack.c.b16 %v249, %v247
      %v300 = vpack.c.b16 %v252, %v250
      %v301 = vpack.c.b16 %v253, %v251
      %v302 = vpack.c.b16 %v256, %v254
      %v303 = vpack.c.b16 %v257, %v255
      %v304 = vpack.c.b16 %v260, %v258
      %v305 = vpack.c.b16 %v261, %v259
      %v306 = vpack.c.b16 %v264, %v262
      %v307 = vpack.c.b16 %v265, %v263
      %v308 = vpack.c.b16 %v268, %v266
      %v309 = vpack.c.b16 %v269, %v267
      %v310 = vpack.c.b16 %v272, %v270
      %v311 = vpack.c.b16 %v273, %v271
      %v312 = vpack.c.b16 %v276, %v274
      %v313 = vpack.c.b16 %v277, %v275
      %v314 = vpack.c.b16 %v280, %v278
      %v315 = vpack.c.b16 %v281, %v279
      %v316 = vpack.c.b16 %v284, %v282
      %v317 = vpack.c.b16 %v285, %v283
      %350 = vmatpush.bf16.msra.mxu0 %v300
      %351 = vmatpush.bf16.msra.mxu0 %v298
      %352 = vmatpush.bf16.msra.mxu0 %v296
      %353 = vmatpush.bf16.msra.mxu0 %v294
      %354 = vmatpush.bf16.msra.mxu0 %v292
      %355 = vmatpush.bf16.msra.mxu0 %v290
      %356 = vmatpush.bf16.msra.mxu0 %v288
      %357 = vmatpush.bf16.msra.mxu0 %v286
      %358 = vmatmul.bf16.gmra.mxu0 %v156
      %v359 = vpop.f32.mrf.mxu0
      %v360 = vadd.f32 0.0, %v359
      %v361 = vpop.f32.mrf.mxu0
      %v362 = vadd.f32 0.0, %v361
      %363 = vdwg.mxu0
      %364 = vmatpush.bf16.msra.mxu0 %v316
      %365 = vmatpush.bf16.msra.mxu0 %v314
      %366 = vmatpush.bf16.msra.mxu0 %v312
      %367 = vmatpush.bf16.msra.mxu0 %v310
      %368 = vmatpush.bf16.msra.mxu0 %v308
      %369 = vmatpush.bf16.msra.mxu0 %v306
      %370 = vmatpush.bf16.msra.mxu0 %v304
      %371 = vmatpush.bf16.msra.mxu0 %v302
      %372 = vmatmul.bf16.gmra.mxu0 %v157
      %v373 = vpop.f32.mrf.mxu0
      %v374 = vadd.f32 %v360, %v373
      %v375 = vpop.f32.mrf.mxu0
      %v376 = vadd.f32 %v362, %v375
      %377 = vdwg.mxu0
      %378 = vmatpush.bf16.msra.mxu0 %v301
      %379 = vmatpush.bf16.msra.mxu0 %v299
      %380 = vmatpush.bf16.msra.mxu0 %v297
      %381 = vmatpush.bf16.msra.mxu0 %v295
      %382 = vmatpush.bf16.msra.mxu0 %v293
      %383 = vmatpush.bf16.msra.mxu0 %v291
      %384 = vmatpush.bf16.msra.mxu0 %v289
      %385 = vmatpush.bf16.msra.mxu0 %v287
      %386 = vmatmul.bf16.gmra.mxu0 %v156
      %v387 = vpop.f32.mrf.mxu0
      %v388 = vadd.f32 0.0, %v387
      %v389 = vpop.f32.mrf.mxu0
      %v390 = vadd.f32 0.0, %v389
      %391 = vdwg.mxu0
      %392 = vmatpush.bf16.msra.mxu0 %v317
      %393 = vmatpush.bf16.msra.mxu0 %v315
      %394 = vmatpush.bf16.msra.mxu0 %v313
      %395 = vmatpush.bf16.msra.mxu0 %v311
      %396 = vmatpush.bf16.msra.mxu0 %v309
      %397 = vmatpush.bf16.msra.mxu0 %v307
      %398 = vmatpush.bf16.msra.mxu0 %v305
      %399 = vmatpush.bf16.msra.mxu0 %v303
      %400 = vmatmul.bf16.gmra.mxu0 %v157
      %v401 = vpop.f32.mrf.mxu0
      %v402 = vadd.f32 %v388, %v401
      %v403 = vpop.f32.mrf.mxu0
      %v404 = vadd.f32 %v390, %v403
      %405 = vdwg.mxu0
      %406 = vst [vmem:[%s150] sm:$0xff] %v374
      %407 = vst [vmem:[%s150 + $0x8] sm:$0xff] %v402
      %408 = vst [vmem:[%s150 + $0x10] sm:$0xff] %v376
      %409 = vst [vmem:[%s150 + $0x18] sm:$0xff] %v404
      %s410 = smul.u32 2, %s13
      %p411 = scmp.lt.s32.totalorder %s410, 3
      %s412 = scalar_select %p411, %s410, 3
      %s413 = smul.addr %s412, 2
      %s414 = smul.addr %s413, 8
      %s415 = scalar_lea.vmem %s2, %s414
      // Predicated region
      $region29: #{_impl.7} parent=27 // pred_check
        %p416 = pneg %p78
      $region30: #{_impl.7} parent=27 // pred_check_branch
        %418 = sbr.rel (%p416) target = $region32
      $region31: #{_impl.7} parent=27 // pred_region
        %s419 = smul.u32 2, %s13
      $region32: #{_impl.7} parent=27 // pred_fallthru
        _
    $region28: #{_impl.7} parent=5 // pred_fallthru
      _
    %p420 = scmp.le.s32.totalorder 2, %s8
    // Predicated region
    $region33: #{_impl.7} parent=5 // pred_check
      %p421 = pneg %p420
    $region34: #{_impl.7} parent=5 // pred_check_branch
      %423 = sbr.rel (%p421) target = $region36
    $region35: #{_impl.7} parent=5 // pred_region
      %s424 = ssub.s32 %s8, 2
      // Predicated region
      $region37: #{_impl.7} parent=35 // pred_check
        %p425 = pneg %p84
      $region38: #{_impl.7} parent=35 // pred_check_branch
        %427 = sbr.rel (%p425) target = $region40
      $region39: #{_impl.7} parent=35 // pred_region
        %s428 = smul.u32 2, %s14
        %p429 = scmp.lt.s32.totalorder %s428, 3
        %s430 = scalar_select %p429, %s428, 3
        %s431 = smul.addr %s430, 2
        %s432 = smul.addr %s431, 8
        %s433 = scalar_lea.vmem %s2, %s432
      $region40: #{_impl.7} parent=35 // pred_fallthru
        _
    $region36: #{_impl.7} parent=5 // pred_fallthru
      _
  $region6: #{_impl.7} parent=0 // loop_footer
    %s12 = sadd.s32 1, %s8
  $region7: #{_impl.7} parent=0 // loop_footer_branch
    %7 = sbr.rel target = $region3
  $region8: #{_impl.7} parent=0 // loop_exit
    _

// kernel: _impl.6
$region0: #{_impl.6}
  #allocation0 [shape = 'u32[]', space=smem, size = 0x4, offset = 0x4, fixed_abs, tag = 'smem constant byte address 0x4 - core index']
  #allocation1 [shape = 'u32[72,128]{1,0:T(1,128)}', space=vmem, size = 0x9000, scoped, tag = 'internal scratch']
  #allocation2 [shape = 'f32[16,128]{1,0:T(8,128)}', space=vmem, size = 0x2000, scoped, tag = 'scratch operand']
  %s0 = inlined_call_operand.vmem [shape: f32[4,8], index: 0, kind: input, shape index: {}]
  %s1 = inlined_call_operand.vmem [shape: f32[32,256], index: 1, kind: input, shape index: {}]
  %s2 = inlined_call_operand.vmem [shape: f32[32,128], index: 2, kind: input, shape index: {}]
  %s3 = inlined_call_operand.vmem [shape: f32[4,1,128], index: 3, kind: input, shape index: {}]
  %s4 = inlined_call_operand.vmem [shape: bf16[256,256], index: 4, kind: input, shape index: {}]
  %s5 = inlined_call_operand.hbm [shape: bf16[128,128], index: 5, kind: input, shape index: {}]
  %s6 = inlined_call_operand.hbm [shape: bf16[128,128], index: 6, kind: input, shape index: {}]
  %s7 = inlined_call_operand.hbm [shape: bf16[128,128], index: 7, kind: input, shape index: {}]
  %s8 = inlined_call_operand.vmem [shape: f32[1,128], index: 8, kind: input, shape index: {}]
  %s9 = inlined_call_operand.vmem [shape: bf16[128,128], index: 9, kind: input, shape index: {}]
  %s10 = inlined_call_operand.vmem [shape: f32[1,128], index: 10, kind: input, shape index: {}]
  %s11 = inlined_call_operand.vmem [shape: f32[32,128], index: 11, kind: output, shape index: {}]
  %s12 = sld [smem:[#allocation0]]
  $region101: #{_impl.6} parent=0
    _
  %s14 = ssub.s32 1, %s12
  %s15 = scalar_select 0, %s14, %s12
  $region1: #{_impl.6} parent=0
    #allocation3 [shape = 'u8[2048]{0}', space=smem, size = 0x800, scoped, tag = 'input window, operand 0, single buffered']
    #allocation4 [shape = 's32[2]{0}', space=sflag, size = 0x8, scoped, tag = 'scoped memory for _impl.6']
    #allocation5 [shape = 's32[2]{0}', space=sflag, size = 0x8, scoped, tag = 'scoped memory for _impl.6']
    #allocation6 [shape = 'u8[32768]{0}', space=vmem, size = 0x8000, scoped, tag = 'input window, operand 5, single buffered']
    #allocation7 [shape = 'u8[32768]{0}', space=vmem, size = 0x8000, scoped, tag = 'input window, operand 6, single buffered']
    #allocation8 [shape = 's32[1]{0}', space=sflag, size = 0x4, scoped, tag = 'scoped memory for _impl.6']
    #allocation9 [shape = 'u8[32768]{0}', space=vmem, size = 0x8000, scoped, tag = 'input window, operand 7, single buffered']
    %16 = vsyncpa [#allocation5], 0
    %17 = vsyncpa [#allocation4], 0
    %18 = vsyncpa [#allocation8], 0
    loop: start=0, step=1, limit=10
    $region2: #{_impl.6} parent=1 // loop_pre_header
      _
    $region3: #{_impl.6} parent=1 // loop_header
      %s20 = sphi 0, %s24
      %p21 = scmp.ge.s32.totalorder %s20, 10
      %s27 = sphi 0, %s39
      %s28 = sphi 0, %s35
      %s29 = sphi 0, %s27
      %s30 = sphi 0, %s28
      %s31 = sphi 0, %s29
      %s32 = sphi 0, %s30
      %s40 = sphi 0, %s40
      %s42 = sphi 0, %s40
      %s43 = sphi 0, %s42
      %s57 = sphi 0, %s43
      %s63 = sphi 0, %s65
      %s66 = sphi 0, %s63
      %s67 = sphi 0, %s66
      %s83 = sphi 0, %s67
      %s89 = sphi 0, %s91
      %s92 = sphi 0, %s89
      %s93 = sphi 0, %s92
      %s109 = sphi 0, %s93
      %s115 = sphi 0, %s117
      %s118 = sphi 0, %s115
      %s119 = sphi 0, %s118
      %s135 = sphi 0, %s119
      %s139 = sphi 0, %s139
      %s141 = sphi 0, %s139
      %s142 = sphi 0, %s141
      %s156 = sphi 0, %s142
      %s160 = sphi 0, %s160
      %s162 = sphi 0, %s160
      %s163 = sphi 0, %s162
      %s177 = sphi 0, %s163
      %s181 = sphi 0, %s181
      %s183 = sphi 0, %s181
      %s184 = sphi 0, %s183
      %s198 = sphi 0, %s184
      %s202 = sphi 0, %s202
      %s204 = sphi 0, %s202
      %s205 = sphi 0, %s204
      %s219 = sphi 0, %s205
      %s223 = sphi 0, %s223
      %s225 = sphi 0, %s223
      %s226 = sphi 0, %s225
      %s240 = sphi 0, %s226
      %s244 = sphi 0, %s244
      %s246 = sphi 0, %s244
      %s247 = sphi 0, %s246
      %s261 = sphi 0, %s247
      %s265 = sphi 0, %s265
      %s267 = sphi 0, %s265
      %s268 = sphi 0, %s267
      %s282 = sphi 0, %s268
      %s288 = sphi 0, %s290
      %s291 = sphi 0, %s288
      %s292 = sphi 0, %s291
      %s308 = sphi 0, %s292
    $region4: #{_impl.6} parent=1 // loop_header_branch
      %23 = sbr.rel (%p21) target = $region8
    $region5: #{_impl.6} parent=1 // loop_body
      %s25 = ssub.s32 %s20, 1
      %s26 = ssub.s32 %s20, 2
      %s33 = sadd.s32 1, %s28
      %p34 = scmp.ge.s32.totalorder %s33, 4
      %s35 = scalar_select %p34, 0, %s33
      %s36 = sadd.s32 1, %s27
      %s37 = scalar_select %p34, %s36, %s27
      %p38 = scmp.ge.s32.totalorder %s37, 2
      %s39 = scalar_select %p38, 0, %s37
      %s41 = sadd.s32 %s40, 1
      %p44 = scmp.eq.s32.totalorder %s20, 7
      %p45 = scmp.ne.s32.totalorder %s40, %s42
      %p46 = scmp.eq.s32.totalorder %s20, 0
      %p47 = por %p45, %p46
      %p48 = scmp.ne.s32.totalorder %s40, %s42
      %p49 = scmp.eq.s32.totalorder %s25, 7
      %p50 = por %p48, %p49
      %p51 = scmp.ne.s32.totalorder %s42, %s43
      %p52 = scmp.eq.s32.totalorder %s25, 0
      %p53 = por %p51, %p52
      %p54 = scmp.ne.s32.totalorder %s42, %s43
      %p55 = scmp.eq.s32.totalorder %s26, 7
      %p56 = por %p54, %p55
      %p58 = scmp.ne.s32.totalorder %s43, %s57
      %p59 = scmp.eq.s32.totalorder %s26, 0
      %p60 = por %p58, %p59
      %s61 = ssub.s32 %s27, %s39
      %p62 = scmp.eq.s32.totalorder %s61, 0
      %s64 = sadd.s32 %s63, 1
      %s65 = scalar_select %p62, %s63, %s64
      %p68 = pneg %p62
      %p69 = scmp.eq.s32.totalorder %s20, 7
      %p70 = por %p68, %p69
      %p71 = scmp.ne.s32.totalorder %s63, %s66
      %p72 = scmp.eq.s32.totalorder %s20, 0
      %p73 = por %p71, %p72
      %p74 = scmp.ne.s32.totalorder %s63, %s66
      %p75 = scmp.eq.s32.totalorder %s25, 7
      %p76 = por %p74, %p75
      %p77 = scmp.ne.s32.totalorder %s66, %s67
      %p78 = scmp.eq.s32.totalorder %s25, 0
      %p79 = por %p77, %p78
      %p80 = scmp.ne.s32.totalorder %s66, %s67
      %p81 = scmp.eq.s32.totalorder %s26, 7
      %p82 = por %p80, %p81
      %p84 = scmp.ne.s32.totalorder %s67, %s83
      %p85 = scmp.eq.s32.totalorder %s26, 0
      %p86 = por %p84, %p85
      %s87 = ssub.s32 %s27, %s39
      %p88 = scmp.eq.s32.totalorder %s87, 0
      %s90 = sadd.s32 %s89, 1
      %s91 = scalar_select %p88, %s89, %s90
      %p94 = pneg %p88
      %p95 = scmp.eq.s32.totalorder %s20, 7
      %p96 = por %p94, %p95
      %p97 = scmp.ne.s32.totalorder %s89, %s92
      %p98 = scmp.eq.s32.totalorder %s20, 0
      %p99 = por %p97, %p98
      %p100 = scmp.ne.s32.totalorder %s89, %s92
      %p101 = scmp.eq.s32.totalorder %s25, 7
      %p102 = por %p100, %p101
      %p103 = scmp.ne.s32.totalorder %s92, %s93
      %p104 = scmp.eq.s32.totalorder %s25, 0
      %p105 = por %p103, %p104
      %p106 = scmp.ne.s32.totalorder %s92, %s93
      %p107 = scmp.eq.s32.totalorder %s26, 7
      %p108 = por %p106, %p107
      %p110 = scmp.ne.s32.totalorder %s93, %s109
      %p111 = scmp.eq.s32.totalorder %s26, 0
      %p112 = por %p110, %p111
      %s113 = ssub.s32 %s28, %s35
      %p114 = scmp.eq.s32.totalorder %s113, 0
      %s116 = sadd.s32 %s115, 1
      %s117 = scalar_select %p114, %s115, %s116
      %p120 = pneg %p114
      %p121 = scmp.eq.s32.totalorder %s20, 7
      %p122 = por %p120, %p121
      %p123 = scmp.ne.s32.totalorder %s115, %s118
      %p124 = scmp.eq.s32.totalorder %s20, 0
      %p125 = por %p123, %p124
      %p126 = scmp.ne.s32.totalorder %s115, %s118
      %p127 = scmp.eq.s32.totalorder %s25, 7
      %p128 = por %p126, %p127
      %p129 = scmp.ne.s32.totalorder %s118, %s119
      %p130 = scmp.eq.s32.totalorder %s25, 0
      %p131 = por %p129, %p130
      %p132 = scmp.ne.s32.totalorder %s118, %s119
      %p133 = scmp.eq.s32.totalorder %s26, 7
      %p134 = por %p132, %p133
      %p136 = scmp.ne.s32.totalorder %s119, %s135
      %p137 = scmp.eq.s32.totalorder %s26, 0
      %p138 = por %p136, %p137
      %s140 = sadd.s32 %s139, 1
      %p143 = scmp.eq.s32.totalorder %s20, 7
      %p144 = scmp.ne.s32.totalorder %s139, %s141
      %p145 = scmp.eq.s32.totalorder %s20, 0
      %p146 = por %p144, %p145
      %p147 = scmp.ne.s32.totalorder %s139, %s141
      %p148 = scmp.eq.s32.totalorder %s25, 7
      %p149 = por %p147, %p148
      %p150 = scmp.ne.s32.totalorder %s141, %s142
      %p151 = scmp.eq.s32.totalorder %s25, 0
      %p152 = por %p150, %p151
      %p153 = scmp.ne.s32.totalorder %s141, %s142
      %p154 = scmp.eq.s32.totalorder %s26, 7
      %p155 = por %p153, %p154
      %p157 = scmp.ne.s32.totalorder %s142, %s156
      %p158 = scmp.eq.s32.totalorder %s26, 0
      %p159 = por %p157, %p158
      %s161 = sadd.s32 %s160, 1
      %p164 = scmp.eq.s32.totalorder %s20, 7
      %p165 = scmp.ne.s32.totalorder %s160, %s162
      %p166 = scmp.eq.s32.totalorder %s20, 0
      %p167 = por %p165, %p166
      %p168 = scmp.ne.s32.totalorder %s160, %s162
      %p169 = scmp.eq.s32.totalorder %s25, 7
      %p170 = por %p168, %p169
      %p171 = scmp.ne.s32.totalorder %s162, %s163
      %p172 = scmp.eq.s32.totalorder %s25, 0
      %p173 = por %p171, %p172
      %p174 = scmp.ne.s32.totalorder %s162, %s163
      %p175 = scmp.eq.s32.totalorder %s26, 7
      %p176 = por %p174, %p175
      %p178 = scmp.ne.s32.totalorder %s163, %s177
      %p179 = scmp.eq.s32.totalorder %s26, 0
      %p180 = por %p178, %p179
      %s182 = sadd.s32 %s181, 1
      %p185 = scmp.eq.s32.totalorder %s20, 7
      %p186 = scmp.ne.s32.totalorder %s181, %s183
      %p187 = scmp.eq.s32.totalorder %s20, 0
      %p188 = por %p186, %p187
      %p189 = scmp.ne.s32.totalorder %s181, %s183
      %p190 = scmp.eq.s32.totalorder %s25, 7
      %p191 = por %p189, %p190
      %p192 = scmp.ne.s32.totalorder %s183, %s184
      %p193 = scmp.eq.s32.totalorder %s25, 0
      %p194 = por %p192, %p193
      %p195 = scmp.ne.s32.totalorder %s183, %s184
      %p196 = scmp.eq.s32.totalorder %s26, 7
      %p197 = por %p195, %p196
      %p199 = scmp.ne.s32.totalorder %s184, %s198
      %p200 = scmp.eq.s32.totalorder %s26, 0
      %p201 = por %p199, %p200
      %s203 = sadd.s32 %s202, 1
      %p206 = scmp.eq.s32.totalorder %s20, 7
      %p207 = scmp.ne.s32.totalorder %s202, %s204
      %p208 = scmp.eq.s32.totalorder %s20, 0
      %p209 = por %p207, %p208
      %p210 = scmp.ne.s32.totalorder %s202, %s204
      %p211 = scmp.eq.s32.totalorder %s25, 7
      %p212 = por %p210, %p211
      %p213 = scmp.ne.s32.totalorder %s204, %s205
      %p214 = scmp.eq.s32.totalorder %s25, 0
      %p215 = por %p213, %p214
      %p216 = scmp.ne.s32.totalorder %s204, %s205
      %p217 = scmp.eq.s32.totalorder %s26, 7
      %p218 = por %p216, %p217
      %p220 = scmp.ne.s32.totalorder %s205, %s219
      %p221 = scmp.eq.s32.totalorder %s26, 0
      %p222 = por %p220, %p221
      %s224 = sadd.s32 %s223, 1
      %p227 = scmp.eq.s32.totalorder %s20, 7
      %p228 = scmp.ne.s32.totalorder %s223, %s225
      %p229 = scmp.eq.s32.totalorder %s20, 0
      %p230 = por %p228, %p229
      %p231 = scmp.ne.s32.totalorder %s223, %s225
      %p232 = scmp.eq.s32.totalorder %s25, 7
      %p233 = por %p231, %p232
      %p234 = scmp.ne.s32.totalorder %s225, %s226
      %p235 = scmp.eq.s32.totalorder %s25, 0
      %p236 = por %p234, %p235
      %p237 = scmp.ne.s32.totalorder %s225, %s226
      %p238 = scmp.eq.s32.totalorder %s26, 7
      %p239 = por %p237, %p238
      %p241 = scmp.ne.s32.totalorder %s226, %s240
      %p242 = scmp.eq.s32.totalorder %s26, 0
      %p243 = por %p241, %p242
      %s245 = sadd.s32 %s244, 1
      %p248 = scmp.eq.s32.totalorder %s20, 7
      %p249 = scmp.ne.s32.totalorder %s244, %s246
      %p250 = scmp.eq.s32.totalorder %s20, 0
      %p251 = por %p249, %p250
      %p252 = scmp.ne.s32.totalorder %s244, %s246
      %p253 = scmp.eq.s32.totalorder %s25, 7
      %p254 = por %p252, %p253
      %p255 = scmp.ne.s32.totalorder %s246, %s247
      %p256 = scmp.eq.s32.totalorder %s25, 0
      %p257 = por %p255, %p256
      %p258 = scmp.ne.s32.totalorder %s246, %s247
      %p259 = scmp.eq.s32.totalorder %s26, 7
      %p260 = por %p258, %p259
      %p262 = scmp.ne.s32.totalorder %s247, %s261
      %p263 = scmp.eq.s32.totalorder %s26, 0
      %p264 = por %p262, %p263
      %s266 = sadd.s32 %s265, 1
      %p269 = scmp.eq.s32.totalorder %s20, 7
      %p270 = scmp.ne.s32.totalorder %s265, %s267
      %p271 = scmp.eq.s32.totalorder %s20, 0
      %p272 = por %p270, %p271
      %p273 = scmp.ne.s32.totalorder %s265, %s267
      %p274 = scmp.eq.s32.totalorder %s25, 7
      %p275 = por %p273, %p274
      %p276 = scmp.ne.s32.totalorder %s267, %s268
      %p277 = scmp.eq.s32.totalorder %s25, 0
      %p278 = por %p276, %p277
      %p279 = scmp.ne.s32.totalorder %s267, %s268
      %p280 = scmp.eq.s32.totalorder %s26, 7
      %p281 = por %p279, %p280
      %p283 = scmp.ne.s32.totalorder %s268, %s282
      %p284 = scmp.eq.s32.totalorder %s26, 0
      %p285 = por %p283, %p284
      %s286 = ssub.s32 %s27, %s39
      %p287 = scmp.eq.s32.totalorder %s286, 0
      %s289 = sadd.s32 %s288, 1
      %s290 = scalar_select %p287, %s288, %s289
      %p293 = pneg %p287
      %p294 = scmp.eq.s32.totalorder %s20, 7
      %p295 = por %p293, %p294
      %p296 = scmp.ne.s32.totalorder %s288, %s291
      %p297 = scmp.eq.s32.totalorder %s20, 0
      %p298 = por %p296, %p297
      %p299 = scmp.ne.s32.totalorder %s288, %s291
      %p300 = scmp.eq.s32.totalorder %s25, 7
      %p301 = por %p299, %p300
      %p302 = scmp.ne.s32.totalorder %s291, %s292
      %p303 = scmp.eq.s32.totalorder %s25, 0
      %p304 = por %p302, %p303
      %p305 = scmp.ne.s32.totalorder %s291, %s292
      %p306 = scmp.eq.s32.totalorder %s26, 7
      %p307 = por %p305, %p306
      %p309 = scmp.ne.s32.totalorder %s292, %s308
      %p310 = scmp.eq.s32.totalorder %s26, 0
      %p311 = por %p309, %p310
      %p312 = scmp.le.s32.totalorder 1, %s20
      %p313 = scmp.lt.s32.totalorder %s20, 9
      %p314 = pnand %p312, %p313
      %p315 = pneg %p314
      // Predicated region
      $region9: #{_impl.6} parent=5 // pred_check
        _
      $region10: #{_impl.6} parent=5 // pred_check_branch
        %317 = sbr.rel (%p314) target = $region12
      $region11: #{_impl.6} parent=5 // pred_region
        %s318 = ssub.s32 %s20, 1
        // Predicated region
        $region13: #{_impl.6} parent=11 // pred_check
          %p319 = pneg %p53
        $region14: #{_impl.6} parent=11 // pred_check_branch
          %321 = sbr.rel (%p319) target = $region16
        $region15: #{_impl.6} parent=11 // pred_region
          %323 = vsyncadd [#allocation5], 0
          %s325 = sshll.u32 %s0, 4
          %s326 = int_to_ptr.vmem [resolvable:$true] %s325
          %328 = dma.vmem_to_smem %s326, 64, [#allocation3], [#allocation5]
        $region16: #{_impl.6} parent=11 // pred_fallthru
          _
        // Predicated region
        $region17: #{_impl.6} parent=11 // pred_check
          %p329 = pneg %p152
        $region18: #{_impl.6} parent=11 // pred_check_branch
          %331 = sbr.rel (%p329) target = $region20
        $region19: #{_impl.6} parent=11 // pred_region
          _
        $region20: #{_impl.6} parent=11 // pred_fallthru
          _
        // Predicated region
        $region21: #{_impl.6} parent=11 // pred_check
          %p332 = pneg %p173
        $region22: #{_impl.6} parent=11 // pred_check_branch
          %334 = sbr.rel (%p332) target = $region24
        $region23: #{_impl.6} parent=11 // pred_region
          %336 = vsyncadd [#allocation4], 0
          %s337 = sshll.u32 %s5, 4
          %s338 = int_to_ptr.hbm [resolvable:$true] %s337
          %s339 = sshll.u32 [#allocation6], 4
          %s340 = int_to_ptr.vmem [resolvable:$true] %s339
          %345 = dma.hbm_to_vmem [thread:$0]  %s338, 1024, %s340, [#allocation4], 64, 64, 4
        $region24: #{_impl.6} parent=11 // pred_fallthru
          _
        // Predicated region
        $region25: #{_impl.6} parent=11 // pred_check
          %p346 = pneg %p194
        $region26: #{_impl.6} parent=11 // pred_check_branch
          %348 = sbr.rel (%p346) target = $region28
        $region27: #{_impl.6} parent=11 // pred_region
          %350 = vsyncadd [#allocation8], 0
          %s351 = sshll.u32 %s6, 4
          %s352 = int_to_ptr.hbm [resolvable:$true] %s351
          %s353 = sshll.u32 [#allocation7], 4
          %s354 = int_to_ptr.vmem [resolvable:$true] %s353
          %359 = dma.hbm_to_vmem [thread:$0]  %s352, 1024, %s354, [#allocation8], 64, 64, 4
        $region28: #{_impl.6} parent=11 // pred_fallthru
          _
        // Predicated region
        $region29: #{_impl.6} parent=11 // pred_check
          %p360 = pneg %p215
        $region30: #{_impl.6} parent=11 // pred_check_branch
          %362 = sbr.rel (%p360) target = $region32
        $region31: #{_impl.6} parent=11 // pred_region
          %364 = vsyncadd [#allocation8], 0
          %s365 = sshll.u32 %s7, 4
          %s366 = int_to_ptr.hbm [resolvable:$true] %s365
          %s367 = sshll.u32 [#allocation9], 4
          %s368 = int_to_ptr.vmem [resolvable:$true] %s367
          %373 = dma.hbm_to_vmem [thread:$0]  %s366, 1024, %s368, [#allocation8], 64, 64, 4
        $region32: #{_impl.6} parent=11 // pred_fallthru
          _
        // Predicated region
        $region33: #{_impl.6} parent=11 // pred_check
          %p374 = pneg %p236
        $region34: #{_impl.6} parent=11 // pred_check_branch
          %376 = sbr.rel (%p374) target = $region36
        $region35: #{_impl.6} parent=11 // pred_region
          _
        $region36: #{_impl.6} parent=11 // pred_fallthru
          _
        // Predicated region
        $region37: #{_impl.6} parent=11 // pred_check
          %p377 = pneg %p257
        $region38: #{_impl.6} parent=11 // pred_check_branch
          %379 = sbr.rel (%p377) target = $region40
        $region39: #{_impl.6} parent=11 // pred_region
          _
        $region40: #{_impl.6} parent=11 // pred_fallthru
          _
        // Predicated region
        $region41: #{_impl.6} parent=11 // pred_check
          %p380 = pneg %p278
        $region42: #{_impl.6} parent=11 // pred_check_branch
          %382 = sbr.rel (%p380) target = $region44
        $region43: #{_impl.6} parent=11 // pred_region
          _
        $region44: #{_impl.6} parent=11 // pred_fallthru
          _
      $region12: #{_impl.6} parent=5 // pred_fallthru
        _
      %p383 = scmp.lt.s32.totalorder %s20, 8
      // Predicated region
      $region45: #{_impl.6} parent=5 // pred_check
        %p384 = pneg %p383
      $region46: #{_impl.6} parent=5 // pred_check_branch
        %386 = sbr.rel (%p384) target = $region48
      $region47: #{_impl.6} parent=5 // pred_region
        // Predicated region
        $region49: #{_impl.6} parent=47 // pred_check
          %p387 = pneg %p73
        $region50: #{_impl.6} parent=47 // pred_check_branch
          %389 = sbr.rel (%p387) target = $region52
        $region51: #{_impl.6} parent=47 // pred_region
          %s390 = smul.u32 2, %s27
          %p391 = scmp.lt.s32.totalorder %s390, 3
          %s392 = scalar_select %p391, %s390, 3
          %s393 = smul.addr %s392, 2
          %s394 = smul.addr %s393, 8
          %s395 = scalar_lea.vmem %s1, %s394
          %s396 = smul.u32 2, %s27
        $region52: #{_impl.6} parent=47 // pred_fallthru
          _
        // Predicated region
        $region53: #{_impl.6} parent=47 // pred_check
          %p397 = pneg %p99
        $region54: #{_impl.6} parent=47 // pred_check_branch
          %399 = sbr.rel (%p397) target = $region56
        $region55: #{_impl.6} parent=47 // pred_region
          %s400 = smul.u32 2, %s27
          %p401 = scmp.lt.s32.totalorder %s400, 3
          %s402 = scalar_select %p401, %s400, 3
          %s403 = smul.addr %s402, 8
          %s404 = scalar_lea.vmem %s2, %s403
          %s405 = smul.u32 2, %s27
        $region56: #{_impl.6} parent=47 // pred_fallthru
          _
        // Predicated region
        $region57: #{_impl.6} parent=47 // pred_check
          %p406 = pneg %p125
        $region58: #{_impl.6} parent=47 // pred_check_branch
          %408 = sbr.rel (%p406) target = $region60
        $region59: #{_impl.6} parent=47 // pred_region
          %p409 = scmp.lt.s32.totalorder %s28, 3
          %s410 = scalar_select %p409, %s28, 3
          %s411 = scalar_lea.vmem %s3, %s410
        $region60: #{_impl.6} parent=47 // pred_fallthru
          _
      $region48: #{_impl.6} parent=5 // pred_fallthru
        _
      %p412 = scmp.le.s32.totalorder 1, %s20
      %p413 = scmp.lt.s32.totalorder %s20, 9
      %p414 = pnand %p412, %p413
      %p415 = pneg %p414
      // Predicated region
      $region61: #{_impl.6} parent=5 // pred_check
        _
      $region62: #{_impl.6} parent=5 // pred_check_branch
        %417 = sbr.rel (%p414) target = $region64
      $region63: #{_impl.6} parent=5 // pred_region
        %s418 = ssub.s32 %s20, 1
        // Predicated region
        $region65: #{_impl.6} parent=63 // pred_check
          %p419 = pneg %p53
        $region66: #{_impl.6} parent=63 // pred_check_branch
          %421 = sbr.rel (%p419) target = $region68
        $region67: #{_impl.6} parent=63 // pred_region
          %423 = dma.done [#allocation5], 64
        $region68: #{_impl.6} parent=63 // pred_fallthru
          _
        // Predicated region
        $region69: #{_impl.6} parent=63 // pred_check
          %p424 = pneg %p173
        $region70: #{_impl.6} parent=63 // pred_check_branch
          %426 = sbr.rel (%p424) target = $region72
        $region71: #{_impl.6} parent=63 // pred_region
          %428 = dma.done [#allocation4], 1024
        $region72: #{_impl.6} parent=63 // pred_fallthru
          _
        // Predicated region
        $region73: #{_impl.6} parent=63 // pred_check
          %p429 = pneg %p194
        $region74: #{_impl.6} parent=63 // pred_check_branch
          %431 = sbr.rel (%p429) target = $region76
        $region75: #{_impl.6} parent=63 // pred_region
          %433 = dma.done [#allocation8], 1024
        $region76: #{_impl.6} parent=63 // pred_fallthru
          _
        // Predicated region
        $region77: #{_impl.6} parent=63 // pred_check
          %p434 = pneg %p215
        $region78: #{_impl.6} parent=63 // pred_check_branch
          %436 = sbr.rel (%p434) target = $region80
        $region79: #{_impl.6} parent=63 // pred_region
          %438 = dma.done [#allocation8], 1024
        $region80: #{_impl.6} parent=63 // pred_fallthru
          _
        %439 = sfence
        %p440 = pneg %p53
        %p441 = pneg %p50
        %s442 = smul.u32 2, %s29
        %p443 = scmp.lt.s32.totalorder %s442, 3
        %s444 = scalar_select %p443, %s442, 3
        %s445 = smul.addr %s444, 2
        %s446 = smul.addr %s445, 8
        %s447 = scalar_lea.vmem %s1, %s446
        %p448 = pneg %p79
        %p449 = pneg %p76
        %s450 = smul.u32 2, %s29
        %p451 = scmp.lt.s32.totalorder %s450, 3
        %s452 = scalar_select %p451, %s450, 3
        %s453 = smul.addr %s452, 8
        %s454 = scalar_lea.vmem %s2, %s453
        %p455 = pneg %p105
        %p456 = pneg %p102
        %p457 = scmp.lt.s32.totalorder %s30, 3
        %s458 = scalar_select %p457, %s30, 3
        %s459 = scalar_lea.vmem %s3, %s458
        %p460 = pneg %p131
        %p461 = pneg %p128
        %p462 = pneg %p152
        %p463 = pneg %p149
        %p464 = pneg %p173
        %p465 = pneg %p170
        %p466 = pneg %p194
        %p467 = pneg %p191
        %p468 = pneg %p215
        %p469 = pneg %p212
        %p470 = pneg %p236
        %p471 = pneg %p233
        %p472 = pneg %p257
        %p473 = pneg %p254
        %p474 = pneg %p278
        %p475 = pneg %p275
        %p476 = pneg %p304
        %p477 = pneg %p301
        %s478 = smul.u32 2, %s29
        %p479 = scmp.lt.s32.totalorder %s478, 3
        %s480 = scalar_select %p479, %s478, 3
        %s481 = smul.addr %s480, 8
        %s482 = scalar_lea.vmem %s11, %s481
        %s483 = smul.u32 2, %s29
        %p484 = scmp.lt.s32.totalorder %s483, 3
        %s485 = scalar_select %p484, %s483, 3
        %s486 = smul.addr %s485, 2
        %s487 = smul.addr %s486, 8
        %s488 = scalar_lea.vmem %s1, %s487
        %s489 = smul.u32 2, %s29
        %s490 = smul.u32 2, %s29
        %p491 = scmp.lt.s32.totalorder %s490, 3
        %s492 = scalar_select %p491, %s490, 3
        %s493 = smul.addr %s492, 8
        %s494 = scalar_lea.vmem %s2, %s493
        %s495 = smul.u32 2, %s29
        %p496 = scmp.lt.s32.totalorder %s30, 3
        %s497 = scalar_select %p496, %s30, 3
        %s498 = scalar_lea.vmem %s3, %s497
        %s499 = smul.u32 2, %s29
        %p500 = scmp.lt.s32.totalorder %s499, 3
        %s501 = scalar_select %p500, %s499, 3
        %s502 = smul.addr %s501, 8
        %s503 = scalar_lea.vmem %s11, %s502
        %s504 = smul.u32 2, %s29
        %p505 = scmp.eq.s32.totalorder %s30, 0
        // Predicated region
        $region81: #{_impl.6} parent=63 // pred_check
          %p506 = pneg %p505
        $region82: #{_impl.6} parent=63 // pred_check_branch
          %508 = sbr.rel (%p506) target = $region84
        $region83: #{_impl.6} parent=63 // pred_region
          %v509 = vld [vmem:[%s488] sm:$0xff]
          %v510 = vld [vmem:[%s488 + $0x8] sm:$0xff]
          %v511 = vld [vmem:[%s488 + $0x10] sm:$0xff]
          %v512 = vld [vmem:[%s488 + $0x18] sm:$0xff]
          %v513 = vpack.c.bf16 %v511, %v509
          %v514 = vpack.c.bf16 %v512, %v510
          %v515 = vld [vmem:[%s4] sm:$0xff]
          %v516 = vld [vmem:[%s4 + $0x8] sm:$0xff]
          %v517 = vld [vmem:[%s4 + $0x10] sm:$0xff]
          %v518 = vld [vmem:[%s4 + $0x18] sm:$0xff]
          %v519 = vld [vmem:[%s4 + $0x20] sm:$0xff]
          %v520 = vld [vmem:[%s4 + $0x28] sm:$0xff]
          %v521 = vld [vmem:[%s4 + $0x30] sm:$0xff]
          %v522 = vld [vmem:[%s4 + $0x38] sm:$0xff]
          %v523 = vld [vmem:[%s4 + $0x40] sm:$0xff]
          %v524 = vld [vmem:[%s4 + $0x48] sm:$0xff]
          %v525 = vld [vmem:[%s4 + $0x50] sm:$0xff]
          %v526 = vld [vmem:[%s4 + $0x58] sm:$0xff]
          %v527 = vld [vmem:[%s4 + $0x60] sm:$0xff]
          %v528 = vld [vmem:[%s4 + $0x68] sm:$0xff]
          %v529 = vld [vmem:[%s4 + $0x70] sm:$0xff]
          %v530 = vld [vmem:[%s4 + $0x78] sm:$0xff]
          %v531 = vld [vmem:[%s4 + $0x80] sm:$0xff]
          %v532 = vld [vmem:[%s4 + $0x88] sm:$0xff]
          %v533 = vld [vmem:[%s4 + $0x90] sm:$0xff]
          %v534 = vld [vmem:[%s4 + $0x98] sm:$0xff]
          %v535 = vld [vmem:[%s4 + $0xa0] sm:$0xff]
          %v536 = vld [vmem:[%s4 + $0xa8] sm:$0xff]
          %v537 = vld [vmem:[%s4 + $0xb0] sm:$0xff]
          %v538 = vld [vmem:[%s4 + $0xb8] sm:$0xff]
          %v539 = vld [vmem:[%s4 + $0xc0] sm:$0xff]
          %v540 = vld [vmem:[%s4 + $0xc8] sm:$0xff]
          %v541 = vld [vmem:[%s4 + $0xd0] sm:$0xff]
          %v542 = vld [vmem:[%s4 + $0xd8] sm:$0xff]
          %v543 = vld [vmem:[%s4 + $0xe0] sm:$0xff]
          %v544 = vld [vmem:[%s4 + $0xe8] sm:$0xff]
          %v545 = vld [vmem:[%s4 + $0xf0] sm:$0xff]
          %v546 = vld [vmem:[%s4 + $0xf8] sm:$0xff]
          %v579 = vunpack.c.l.b16 %v515
          %v580 = vunpack.c.h.b16 %v515
          %v581 = vunpack.c.l.b16 %v516
          %v582 = vunpack.c.h.b16 %v516
          %v583 = vunpack.c.l.b16 %v517
          %v584 = vunpack.c.h.b16 %v517
          %v585 = vunpack.c.l.b16 %v518
          %v586 = vunpack.c.h.b16 %v518
          %v587 = vunpack.c.l.b16 %v519
          %v588 = vunpack.c.h.b16 %v519
          %v589 = vunpack.c.l.b16 %v520
          %v590 = vunpack.c.h.b16 %v520
          %v591 = vunpack.c.l.b16 %v521
          %v592 = vunpack.c.h.b16 %v521
          %v593 = vunpack.c.l.b16 %v522
          %v594 = vunpack.c.h.b16 %v522
          %v595 = vunpack.c.l.b16 %v523
          %v596 = vunpack.c.h.b16 %v523
          %v597 = vunpack.c.l.b16 %v524
          %v598 = vunpack.c.h.b16 %v524
          %v599 = vunpack.c.l.b16 %v525
          %v600 = vunpack.c.h.b16 %v525
          %v601 = vunpack.c.l.b16 %v526
          %v602 = vunpack.c.h.b16 %v526
          %v603 = vunpack.c.l.b16 %v527
          %v604 = vunpack.c.h.b16 %v527
          %v605 = vunpack.c.l.b16 %v528
          %v606 = vunpack.c.h.b16 %v528
          %v607 = vunpack.c.l.b16 %v529
          %v608 = vunpack.c.h.b16 %v529
          %v609 = vunpack.c.l.b16 %v530
          %v610 = vunpack.c.h.b16 %v530
          %v611 = vunpack.c.l.b16 %v531
          %v612 = vunpack.c.h.b16 %v531
          %v613 = vunpack.c.l.b16 %v532
          %v614 = vunpack.c.h.b16 %v532
          %v615 = vunpack.c.l.b16 %v533
          %v616 = vunpack.c.h.b16 %v533
          %v617 = vunpack.c.l.b16 %v534
          %v618 = vunpack.c.h.b16 %v534
          %v619 = vunpack.c.l.b16 %v535
          %v620 = vunpack.c.h.b16 %v535
          %v621 = vunpack.c.l.b16 %v536
          %v622 = vunpack.c.h.b16 %v536
          %v623 = vunpack.c.l.b16 %v537
          %v624 = vunpack.c.h.b16 %v537
          %v625 = vunpack.c.l.b16 %v538
          %v626 = vunpack.c.h.b16 %v538
          %v627 = vunpack.c.l.b16 %v539
          %v628 = vunpack.c.h.b16 %v539
          %v629 = vunpack.c.l.b16 %v540
          %v630 = vunpack.c.h.b16 %v540
          %v631 = vunpack.c.l.b16 %v541
          %v632 = vunpack.c.h.b16 %v541
          %v633 = vunpack.c.l.b16 %v542
          %v634 = vunpack.c.h.b16 %v542
          %v635 = vunpack.c.l.b16 %v543
          %v636 = vunpack.c.h.b16 %v543
          %v637 = vunpack.c.l.b16 %v544
          %v638 = vunpack.c.h.b16 %v544
          %v639 = vunpack.c.l.b16 %v545
          %v640 = vunpack.c.h.b16 %v545
          %v641 = vunpack.c.l.b16 %v546
          %v642 = vunpack.c.h.b16 %v546
          %v643 = vpack.c.b16 %v581, %v579
          %v644 = vpack.c.b16 %v582, %v580
          %v645 = vpack.c.b16 %v585, %v583
          %v646 = vpack.c.b16 %v586, %v584
          %v647 = vpack.c.b16 %v589, %v587
          %v648 = vpack.c.b16 %v590, %v588
          %v649 = vpack.c.b16 %v593, %v591
          %v650 = vpack.c.b16 %v594, %v592
          %v651 = vpack.c.b16 %v597, %v595
          %v652 = vpack.c.b16 %v598, %v596
          %v653 = vpack.c.b16 %v601, %v599
          %v654 = vpack.c.b16 %v602, %v600
          %v655 = vpack.c.b16 %v605, %v603
          %v656 = vpack.c.b16 %v606, %v604
          %v657 = vpack.c.b16 %v609, %v607
          %v658 = vpack.c.b16 %v610, %v608
          %v659 = vpack.c.b16 %v613, %v611
          %v660 = vpack.c.b16 %v614, %v612
          %v661 = vpack.c.b16 %v617, %v615
          %v662 = vpack.c.b16 %v618, %v616
          %v663 = vpack.c.b16 %v621, %v619
          %v664 = vpack.c.b16 %v622, %v620
          %v665 = vpack.c.b16 %v625, %v623
          %v666 = vpack.c.b16 %v626, %v624
          %v667 = vpack.c.b16 %v629, %v627
          %v668 = vpack.c.b16 %v630, %v628
          %v669 = vpack.c.b16 %v633, %v631
          %v670 = vpack.c.b16 %v634, %v632
          %v671 = vpack.c.b16 %v637, %v635
          %v672 = vpack.c.b16 %v638, %v636
          %v673 = vpack.c.b16 %v641, %v639
          %v674 = vpack.c.b16 %v642, %v640
          %707 = vmatpush.bf16.msra.mxu0 %v657
          %708 = vmatpush.bf16.msra.mxu0 %v655
          %709 = vmatpush.bf16.msra.mxu0 %v653
          %710 = vmatpush.bf16.msra.mxu0 %v651
          %711 = vmatpush.bf16.msra.mxu0 %v649
          %712 = vmatpush.bf16.msra.mxu0 %v647
          %713 = vmatpush.bf16.msra.mxu0 %v645
          %714 = vmatpush.bf16.msra.mxu0 %v643
          %715 = vmatmul.bf16.gmra.mxu0 %v513
          %v716 = vpop.f32.mrf.mxu0
          %v717 = vadd.f32 0.0, %v716
          %v718 = vpop.f32.mrf.mxu0
          %v719 = vadd.f32 0.0, %v718
          %720 = vdwg.mxu0
          %721 = vmatpush.bf16.msra.mxu0 %v673
          %722 = vmatpush.bf16.msra.mxu0 %v671
          %723 = vmatpush.bf16.msra.mxu0 %v669
          %724 = vmatpush.bf16.msra.mxu0 %v667
          %725 = vmatpush.bf16.msra.mxu0 %v665
          %726 = vmatpush.bf16.msra.mxu0 %v663
          %727 = vmatpush.bf16.msra.mxu0 %v661
          %728 = vmatpush.bf16.msra.mxu0 %v659
          %729 = vmatmul.bf16.gmra.mxu0 %v514
          %v730 = vpop.f32.mrf.mxu0
          %v731 = vadd.f32 %v717, %v730
          %v732 = vpop.f32.mrf.mxu0
          %v733 = vadd.f32 %v719, %v732
          %734 = vdwg.mxu0
          %735 = vmatpush.bf16.msra.mxu0 %v658
          %736 = vmatpush.bf16.msra.mxu0 %v656
          %737 = vmatpush.bf16.msra.mxu0 %v654
          %738 = vmatpush.bf16.msra.mxu0 %v652
          %739 = vmatpush.bf16.msra.mxu0 %v650
          %740 = vmatpush.bf16.msra.mxu0 %v648
          %741 = vmatpush.bf16.msra.mxu0 %v646
          %742 = vmatpush.bf16.msra.mxu0 %v644
          %743 = vmatmul.bf16.gmra.mxu0 %v513
          %v744 = vpop.f32.mrf.mxu0
          %v745 = vadd.f32 0.0, %v744
          %v746 = vpop.f32.mrf.mxu0
          %v747 = vadd.f32 0.0, %v746
          %748 = vdwg.mxu0
          %749 = vmatpush.bf16.msra.mxu0 %v674
          %750 = vmatpush.bf16.msra.mxu0 %v672
          %751 = vmatpush.bf16.msra.mxu0 %v670
          %752 = vmatpush.bf16.msra.mxu0 %v668
          %753 = vmatpush.bf16.msra.mxu0 %v666
          %754 = vmatpush.bf16.msra.mxu0 %v664
          %755 = vmatpush.bf16.msra.mxu0 %v662
          %756 = vmatpush.bf16.msra.mxu0 %v660
          %757 = vmatmul.bf16.gmra.mxu0 %v514
          %v758 = vpop.f32.mrf.mxu0
          %v759 = vadd.f32 %v745, %v758
          %v760 = vpop.f32.mrf.mxu0
          %v761 = vadd.f32 %v747, %v760
          %762 = vdwg.mxu0
          %v763 = vmul.f32 %v731, %v731
          %v764 = vmul.f32 %v733, %v733
          %v765 = vmul.f32 %v759, %v759
          %v766 = vmul.f32 %v761, %v761
          %v767 = vadd.f32 %v763, %v765
          %v768 = vadd.f32 %v764, %v766
          %v769 = vadd.f32 %v767, 1e-12
          %v770 = vadd.f32 %v768, 1e-12
          %v771 = vrsqrt.pop %v769
          %v772 = vmul.f32 %v771, %v769
          %v773 = vmul.f32 %v772, %v771
          %v774 = vmul.f32 0.5, %v773
          %v775 = vsub.f32 1.5, %v774
          %v776 = vmul.f32 %v771, %v775
          %v777 = vmul.f32 %v769, %v776
          %vm778 = vcmp.eq.f32.partialorder %v769, inf
          %v779 = vsel %vm778, %v769, %v777
          %vm780 = vcmp.eq.f32.partialorder %v769, 0.0
          %v781 = vand.u32 %v769, 2147483648
          %v782 = vsel %vm780, %v781, %v779
          %v783 = vrsqrt.pop %v770
          %v784 = vmul.f32 %v783, %v770
          %v785 = vmul.f32 %v784, %v783
          %v786 = vmul.f32 0.5, %v785
          %v787 = vsub.f32 1.5, %v786
          %v788 = vmul.f32 %v783, %v787
          %v789 = vmul.f32 %v770, %v788
          %vm790 = vcmp.eq.f32.partialorder %v770, inf
          %v791 = vsel %vm790, %v770, %v789
          %vm792 = vcmp.eq.f32.partialorder %v770, 0.0
          %v793 = vand.u32 %v770, 2147483648
          %v794 = vsel %vm792, %v793, %v791
          %v795 = vpack.c.bf16 %v794, %v782
          %v796 = vld [vmem:[#allocation6] sm:$0xf]
          %v797 = vld [vmem:[#allocation6 + $0x4] sm:$0xf]
          %v798 = vld [vmem:[#allocation6 + $0x8] sm:$0xf]
          %v799 = vld [vmem:[#allocation6 + $0xc] sm:$0xf]
          %v800 = vld [vmem:[#allocation6 + $0x10] sm:$0xf]
          %v801 = vld [vmem:[#allocation6 + $0x14] sm:$0xf]
          %v802 = vld [vmem:[#allocation6 + $0x18] sm:$0xf]
          %v803 = vld [vmem:[#allocation6 + $0x1c] sm:$0xf]
          %v804 = vld [vmem:[#allocation6 + $0x20] sm:$0xf]
          %v805 = vld [vmem:[#allocation6 + $0x24] sm:$0xf]
          %v806 = vld [vmem:[#allocation6 + $0x28] sm:$0xf]
          %v807 = vld [vmem:[#allocation6 + $0x2c] sm:$0xf]
          %v808 = vld [vmem:[#allocation6 + $0x30] sm:$0xf]
          %v809 = vld [vmem:[#allocation6 + $0x34] sm:$0xf]
          %v810 = vld [vmem:[#allocation6 + $0x38] sm:$0xf]
          %v811 = vld [vmem:[#allocation6 + $0x3c] sm:$0xf]
          %v828 = vunpack.c.l.b16 %v796
          %v829 = vunpack.c.l.b16 %v797
          %v830 = vunpack.c.l.b16 %v798
          %v831 = vunpack.c.l.b16 %v799
          %v832 = vunpack.c.l.b16 %v800
          %v833 = vunpack.c.l.b16 %v801
          %v834 = vunpack.c.l.b16 %v802
          %v835 = vunpack.c.l.b16 %v803
          %v836 = vunpack.c.l.b16 %v804
          %v837 = vunpack.c.l.b16 %v805
          %v838 = vunpack.c.l.b16 %v806
          %v839 = vunpack.c.l.b16 %v807
          %v840 = vunpack.c.l.b16 %v808
          %v841 = vunpack.c.l.b16 %v809
          %v842 = vunpack.c.l.b16 %v810
          %v843 = vunpack.c.l.b16 %v811
          %v844 = vpack.c.b16 %v829, %v828
          %v845 = vpack.c.b16 %v831, %v830
          %v846 = vpack.c.b16 %v833, %v832
          %v847 = vpack.c.b16 %v835, %v834
          %v848 = vpack.c.b16 %v837, %v836
          %v849 = vpack.c.b16 %v839, %v838
          %v850 = vpack.c.b16 %v841, %v840
          %v851 = vpack.c.b16 %v843, %v842
          %860 = vmatpush.bf16.msra.mxu0 %v851
          %861 = vmatpush.bf16.msra.mxu0 %v850
          %862 = vmatpush.bf16.msra.mxu0 %v849
          %863 = vmatpush.bf16.msra.mxu0 %v848
          %864 = vmatpush.bf16.msra.mxu0 %v847
          %865 = vmatpush.bf16.msra.mxu0 %v846
          %866 = vmatpush.bf16.msra.mxu0 %v845
          %867 = vmatpush.bf16.msra.mxu0 %v844
          %868 = vmatmul.bf16.gmra.mxu0 %v795
          %v869 = vpop.f32.mrf.mxu0
          %v870 = vadd.f32 0.0, %v869
          %v871 = vpop.f32.mrf.mxu0
          %v872 = vadd.f32 0.0, %v871
          %873 = vdwg.mxu0
          %v874 = vadd.f32 %v870, 1.0
          %v875 = vlog2.pop %v874
          %v876 = vmul.f32 %v875, 0.6931472
          %v877 = vmul.f32 -0.5, %v870
          %v878 = vadd.f32 %v877, 1.0
          %v879 = vmul.f32 %v878, %v870
          %v880 = vand.u32 2147483647, %v870
          %vm881 = vcmp.lt.f32.partialorder %v880, 0.0004427343
          %v882 = vsel %vm881, %v879, %v876
          %v883 = vadd.f32 %v872, 1.0
          %v884 = vlog2.pop %v883
          %v885 = vmul.f32 %v884, 0.6931472
          %v886 = vmul.f32 -0.5, %v872
          %v887 = vadd.f32 %v886, 1.0
          %v888 = vmul.f32 %v887, %v872
          %v889 = vand.u32 2147483647, %v872
          %vm890 = vcmp.lt.f32.partialorder %v889, 0.0004427343
          %v891 = vsel %vm890, %v888, %v885
          %v892 = vsub.f32 %v882, 2.0
          %v893 = vsub.f32 %v891, 2.0
          %v894 = vmul.f32 %v892, 0.5
          %v895 = vmul.f32 %v893, 0.5
          %s896 = sld [smem:[#allocation3]]
          %v897 = vstv %s896
          %v898 = vmul.f32 %v897, %v894
          %v899 = vmul.f32 %v897, %v895
          %s900 = sld [smem:[#allocation3 + $0x1]]
          %v901 = vld [vmem:[%s494] sm:$0xff]
          %v902 = vld [vmem:[%s494 + $0x8] sm:$0xff]
          %v903 = vstv %s900
          %v904 = vmul.f32 %v903, %v901
          %v905 = vmul.f32 %v903, %v902
          %v906 = vadd.f32 %v898, %v904
          %v907 = vadd.f32 %v899, %v905
          %908 = vst [vmem:[#allocation2] sm:$0xff] %v906
          %909 = vst [vmem:[#allocation2 + $0x8] sm:$0xff] %v907
        $region84: #{_impl.6} parent=63 // pred_fallthru
          _
        %v910 = vld [vmem:[#allocation2] sm:$0xff]
        %v911 = vld [vmem:[#allocation2 + $0x8] sm:$0xff]
        %v912 = vld [vmem:[%s498] sm:$0x1]
        %v913 = vpack.c.bf16 %v911, %v910
        %v914 = vld [vmem:[#allocation7] sm:$0xf]
        %v915 = vld [vmem:[#allocation7 + $0x4] sm:$0xf]
        %v916 = vld [vmem:[#allocation7 + $0x8] sm:$0xf]
        %v917 = vld [vmem:[#allocation7 + $0xc] sm:$0xf]
        %v918 = vld [vmem:[#allocation7 + $0x10] sm:$0xf]
        %v919 = vld [vmem:[#allocation7 + $0x14] sm:$0xf]
        %v920 = vld [vmem:[#allocation7 + $0x18] sm:$0xf]
        %v921 = vld [vmem:[#allocation7 + $0x1c] sm:$0xf]
        %v922 = vld [vmem:[#allocation7 + $0x20] sm:$0xf]
        %v923 = vld [vmem:[#allocation7 + $0x24] sm:$0xf]
        %v924 = vld [vmem:[#allocation7 + $0x28] sm:$0xf]
        %v925 = vld [vmem:[#allocation7 + $0x2c] sm:$0xf]
        %v926 = vld [vmem:[#allocation7 + $0x30] sm:$0xf]
        %v927 = vld [vmem:[#allocation7 + $0x34] sm:$0xf]
        %v928 = vld [vmem:[#allocation7 + $0x38] sm:$0xf]
        %v929 = vld [vmem:[#allocation7 + $0x3c] sm:$0xf]
        %v931 = vperm.slane %v912, 0
        %v949 = vunpack.c.l.b16 %v914
        %v950 = vunpack.c.l.b16 %v915
        %v951 = vunpack.c.l.b16 %v916
        %v952 = vunpack.c.l.b16 %v917
        %v953 = vunpack.c.l.b16 %v918
        %v954 = vunpack.c.l.b16 %v919
        %v955 = vunpack.c.l.b16 %v920
        %v956 = vunpack.c.l.b16 %v921
        %v957 = vunpack.c.l.b16 %v922
        %v958 = vunpack.c.l.b16 %v923
        %v959 = vunpack.c.l.b16 %v924
        %v960 = vunpack.c.l.b16 %v925
        %v961 = vunpack.c.l.b16 %v926
        %v962 = vunpack.c.l.b16 %v927
        %v963 = vunpack.c.l.b16 %v928
        %v964 = vunpack.c.l.b16 %v929
        %v965 = vpack.c.b16 %v950, %v949
        %v966 = vpack.c.b16 %v952, %v951
        %v967 = vpack.c.b16 %v954, %v953
        %v968 = vpack.c.b16 %v956, %v955
        %v969 = vpack.c.b16 %v958, %v957
        %v970 = vpack.c.b16 %v960, %v959
        %v971 = vpack.c.b16 %v962, %v961
        %v972 = vpack.c.b16 %v964, %v963
        %981 = vmatpush.bf16.msra.mxu0 %v972
        %982 = vmatpush.bf16.msra.mxu0 %v971
        %983 = vmatpush.bf16.msra.mxu0 %v970
        %984 = vmatpush.bf16.msra.mxu0 %v969
        %985 = vmatpush.bf16.msra.mxu0 %v968
        %986 = vmatpush.bf16.msra.mxu0 %v967
        %987 = vmatpush.bf16.msra.mxu0 %v966
        %988 = vmatpush.bf16.msra.mxu0 %v965
        %989 = vmatmul.bf16.gmra.mxu0 %v913
        %v990 = vpop.f32.mrf.mxu0
        %v991 = vadd.f32 %v931, %v990
        %v992 = vpop.f32.mrf.mxu0
        %v993 = vadd.f32 %v931, %v992
        %994 = vdwg.mxu0
        %v995 = vsub.f32 0.0, %v991
        %v996 = vsub.f32 0.0, %v993
        %v997 = vmul.f32 %v995, 1.442695
        %v998 = vpow.pop %v997
        %v999 = vmul.f32 %v996, 1.442695
        %v1000 = vpow.pop %v999
        %v1001 = vadd.f32 %v998, 1.0
        %v1002 = vadd.f32 %v1000, 1.0
        %v1003 = vrcp.pop %v1001
        %v1004 = vrcp.pop %v1002
        %v1005 = vmul.f32 %v991, %v1003
        %v1006 = vmul.f32 %v993, %v1004
        %v1007 = vpack.c.bf16 %v1006, %v1005
        %v1008 = vld [vmem:[#allocation9] sm:$0xf]
        %v1009 = vld [vmem:[#allocation9 + $0x4] sm:$0xf]
        %v1010 = vld [vmem:[#allocation9 + $0x8] sm:$0xf]
        %v1011 = vld [vmem:[#allocation9 + $0xc] sm:$0xf]
        %v1012 = vld [vmem:[#allocation9 + $0x10] sm:$0xf]
        %v1013 = vld [vmem:[#allocation9 + $0x14] sm:$0xf]
        %v1014 = vld [vmem:[#allocation9 + $0x18] sm:$0xf]
        %v1015 = vld [vmem:[#allocation9 + $0x1c] sm:$0xf]
        %v1016 = vld [vmem:[#allocation9 + $0x20] sm:$0xf]
        %v1017 = vld [vmem:[#allocation9 + $0x24] sm:$0xf]
        %v1018 = vld [vmem:[#allocation9 + $0x28] sm:$0xf]
        %v1019 = vld [vmem:[#allocation9 + $0x2c] sm:$0xf]
        %v1020 = vld [vmem:[#allocation9 + $0x30] sm:$0xf]
        %v1021 = vld [vmem:[#allocation9 + $0x34] sm:$0xf]
        %v1022 = vld [vmem:[#allocation9 + $0x38] sm:$0xf]
        %v1023 = vld [vmem:[#allocation9 + $0x3c] sm:$0xf]
        %v1024 = vld [vmem:[%s8] sm:$0x1]
        %v1026 = vperm.slane %v1024, 0
        %v1044 = vunpack.c.l.b16 %v1008
        %v1045 = vunpack.c.l.b16 %v1009
        %v1046 = vunpack.c.l.b16 %v1010
        %v1047 = vunpack.c.l.b16 %v1011
        %v1048 = vunpack.c.l.b16 %v1012
        %v1049 = vunpack.c.l.b16 %v1013
        %v1050 = vunpack.c.l.b16 %v1014
        %v1051 = vunpack.c.l.b16 %v1015
        %v1052 = vunpack.c.l.b16 %v1016
        %v1053 = vunpack.c.l.b16 %v1017
        %v1054 = vunpack.c.l.b16 %v1018
        %v1055 = vunpack.c.l.b16 %v1019
        %v1056 = vunpack.c.l.b16 %v1020
        %v1057 = vunpack.c.l.b16 %v1021
        %v1058 = vunpack.c.l.b16 %v1022
        %v1059 = vunpack.c.l.b16 %v1023
        %v1060 = vpack.c.b16 %v1045, %v1044
        %v1061 = vpack.c.b16 %v1047, %v1046
        %v1062 = vpack.c.b16 %v1049, %v1048
        %v1063 = vpack.c.b16 %v1051, %v1050
        %v1064 = vpack.c.b16 %v1053, %v1052
        %v1065 = vpack.c.b16 %v1055, %v1054
        %v1066 = vpack.c.b16 %v1057, %v1056
        %v1067 = vpack.c.b16 %v1059, %v1058
        %1076 = vmatpush.bf16.msra.mxu0 %v1067
        %1077 = vmatpush.bf16.msra.mxu0 %v1066
        %1078 = vmatpush.bf16.msra.mxu0 %v1065
        %1079 = vmatpush.bf16.msra.mxu0 %v1064
        %1080 = vmatpush.bf16.msra.mxu0 %v1063
        %1081 = vmatpush.bf16.msra.mxu0 %v1062
        %1082 = vmatpush.bf16.msra.mxu0 %v1061
        %1083 = vmatpush.bf16.msra.mxu0 %v1060
        %1084 = vmatmul.bf16.gmra.mxu0 %v1007
        %v1085 = vpop.f32.mrf.mxu0
        %v1086 = vadd.f32 %v1026, %v1085
        %v1087 = vpop.f32.mrf.mxu0
        %v1088 = vadd.f32 %v1026, %v1087
        %1089 = vdwg.mxu0
        %s1090 = smul.u32 %s30, 128
        %s1091 = sadd.s32 %s1090, 3
        %s1092 = sld [smem:[#allocation3 + %s1091]]
        %v1093 = vstv %s1092
        %v1094 = vmul.f32 %v1093, %v1086
        %v1095 = vmul.f32 %v1093, %v1088
        %v1096 = vsub.f32 %v910, %v1094
        %v1097 = vsub.f32 %v911, %v1095
        %s1098 = sadd.s32 %s1090, 2
        %s1099 = sld [smem:[#allocation3 + %s1098]]
        %v1100 = vstv %s1099
        %v1101 = vmul.f32 %v1096, %v1100
        %v1102 = vmul.f32 %v1097, %v1100
        %s1103 = sadd.s32 %s1090, 4
        %s1104 = sld [smem:[#allocation3 + %s1103]]
        %v1105 = vstv %s1104
        %v1106 = vmul.f32 %v1105, %v1101
        %v1107 = vmul.f32 %v1105, %v1102
        %s1108 = sadd.s32 %s1090, 5
        %s1109 = sld [smem:[#allocation3 + %s1108]]
        %v1110 = vstv %s1109
        %v1111 = vmul.f32 %v1110, %v1086
        %v1112 = vmul.f32 %v1110, %v1088
        %v1113 = vadd.f32 %v1106, %v1111
        %v1114 = vadd.f32 %v1107, %v1112
        %1115 = vst [vmem:[#allocation2] sm:$0xff] %v1113
        %1116 = vst [vmem:[#allocation2 + $0x8] sm:$0xff] %v1114
        %p1117 = scmp.eq.s32.totalorder %s30, 3
        // Predicated region
        $region85: #{_impl.6} parent=63 // pred_check
          %p1118 = pneg %p1117
        $region86: #{_impl.6} parent=63 // pred_check_branch
          %1120 = sbr.rel (%p1118) target = $region88
        $region87: #{_impl.6} parent=63 // pred_region
          %v1121 = vpack.c.bf16 %v1114, %v1113
          %v1122 = vld [vmem:[%s9] sm:$0xf]
          %v1123 = vld [vmem:[%s9 + $0x4] sm:$0xf]
          %v1124 = vld [vmem:[%s9 + $0x8] sm:$0xf]
          %v1125 = vld [vmem:[%s9 + $0xc] sm:$0xf]
          %v1126 = vld [vmem:[%s9 + $0x10] sm:$0xf]
          %v1127 = vld [vmem:[%s9 + $0x14] sm:$0xf]
          %v1128 = vld [vmem:[%s9 + $0x18] sm:$0xf]
          %v1129 = vld [vmem:[%s9 + $0x1c] sm:$0xf]
          %v1130 = vld [vmem:[%s9 + $0x20] sm:$0xf]
          %v1131 = vld [vmem:[%s9 + $0x24] sm:$0xf]
          %v1132 = vld [vmem:[%s9 + $0x28] sm:$0xf]
          %v1133 = vld [vmem:[%s9 + $0x2c] sm:$0xf]
          %v1134 = vld [vmem:[%s9 + $0x30] sm:$0xf]
          %v1135 = vld [vmem:[%s9 + $0x34] sm:$0xf]
          %v1136 = vld [vmem:[%s9 + $0x38] sm:$0xf]
          %v1137 = vld [vmem:[%s9 + $0x3c] sm:$0xf]
          %v1138 = vld [vmem:[%s10] sm:$0x1]
          %v1140 = vperm.slane %v1138, 0
          %v1158 = vunpack.c.l.b16 %v1122
          %v1159 = vunpack.c.l.b16 %v1123
          %v1160 = vunpack.c.l.b16 %v1124
          %v1161 = vunpack.c.l.b16 %v1125
          %v1162 = vunpack.c.l.b16 %v1126
          %v1163 = vunpack.c.l.b16 %v1127
          %v1164 = vunpack.c.l.b16 %v1128
          %v1165 = vunpack.c.l.b16 %v1129
          %v1166 = vunpack.c.l.b16 %v1130
          %v1167 = vunpack.c.l.b16 %v1131
          %v1168 = vunpack.c.l.b16 %v1132
          %v1169 = vunpack.c.l.b16 %v1133
          %v1170 = vunpack.c.l.b16 %v1134
          %v1171 = vunpack.c.l.b16 %v1135
          %v1172 = vunpack.c.l.b16 %v1136
          %v1173 = vunpack.c.l.b16 %v1137
          %v1174 = vpack.c.b16 %v1159, %v1158
          %v1175 = vpack.c.b16 %v1161, %v1160
          %v1176 = vpack.c.b16 %v1163, %v1162
          %v1177 = vpack.c.b16 %v1165, %v1164
          %v1178 = vpack.c.b16 %v1167, %v1166
          %v1179 = vpack.c.b16 %v1169, %v1168
          %v1180 = vpack.c.b16 %v1171, %v1170
          %v1181 = vpack.c.b16 %v1173, %v1172
          %1190 = vmatpush.bf16.msra.mxu0 %v1181
          %1191 = vmatpush.bf16.msra.mxu0 %v1180
          %1192 = vmatpush.bf16.msra.mxu0 %v1179
          %1193 = vmatpush.bf16.msra.mxu0 %v1178
          %1194 = vmatpush.bf16.msra.mxu0 %v1177
          %1195 = vmatpush.bf16.msra.mxu0 %v1176
          %1196 = vmatpush.bf16.msra.mxu0 %v1175
          %1197 = vmatpush.bf16.msra.mxu0 %v1174
          %1198 = vmatmul.bf16.gmra.mxu0 %v1121
          %v1199 = vpop.f32.mrf.mxu0
          %v1200 = vadd.f32 %v1140, %v1199
          %v1201 = vpop.f32.mrf.mxu0
          %v1202 = vadd.f32 %v1140, %v1201
          %1203 = vdwg.mxu0
          %v1204 = vmax.f32 %v1200, 0.0
          %v1205 = vmax.f32 %v1202, 0.0
          %v1206 = vand.u32 2147483647, %v1200
          %v1207 = vand.u32 2147483647, %v1202
          %v1208 = vsub.f32 0.0, %v1206
          %v1209 = vsub.f32 0.0, %v1207
          %v1210 = vmul.f32 %v1208, 1.442695
          %v1211 = vpow.pop %v1210
          %v1212 = vmul.f32 %v1209, 1.442695
          %v1213 = vpow.pop %v1212
          %v1214 = vadd.f32 %v1211, 1.0
          %v1215 = vlog2.pop %v1214
          %v1216 = vmul.f32 %v1215, 0.6931472
          %v1217 = vmul.f32 -0.5, %v1211
          %v1218 = vadd.f32 %v1217, 1.0
          %v1219 = vmul.f32 %v1218, %v1211
          %v1220 = vand.u32 2147483647, %v1211
          %vm1221 = vcmp.lt.f32.partialorder %v1220, 0.0004427343
          %v1222 = vsel %vm1221, %v1219, %v1216
          %v1223 = vadd.f32 %v1213, 1.0
          %v1224 = vlog2.pop %v1223
          %v1225 = vmul.f32 %v1224, 0.6931472
          %v1226 = vmul.f32 -0.5, %v1213
          %v1227 = vadd.f32 %v1226, 1.0
          %v1228 = vmul.f32 %v1227, %v1213
          %v1229 = vand.u32 2147483647, %v1213
          %vm1230 = vcmp.lt.f32.partialorder %v1229, 0.0004427343
          %v1231 = vsel %vm1230, %v1228, %v1225
          %v1232 = vadd.f32 %v1204, %v1222
          %v1233 = vadd.f32 %v1205, %v1231
          %1234 = vst [vmem:[%s503] sm:$0xff] %v1232
          %1235 = vst [vmem:[%s503 + $0x8] sm:$0xff] %v1233
        $region88: #{_impl.6} parent=63 // pred_fallthru
          _
        %s1236 = smul.u32 2, %s29
        %p1237 = scmp.lt.s32.totalorder %s1236, 3
        %s1238 = scalar_select %p1237, %s1236, 3
        %s1239 = smul.addr %s1238, 8
        %s1240 = scalar_lea.vmem %s11, %s1239
        // Predicated region
        $region89: #{_impl.6} parent=63 // pred_check
          %p1241 = pneg %p301
        $region90: #{_impl.6} parent=63 // pred_check_branch
          %1243 = sbr.rel (%p1241) target = $region92
        $region91: #{_impl.6} parent=63 // pred_region
          %s1244 = smul.u32 2, %s29
        $region92: #{_impl.6} parent=63 // pred_fallthru
          _
      $region64: #{_impl.6} parent=5 // pred_fallthru
        _
      %p1245 = scmp.le.s32.totalorder 2, %s20
      // Predicated region
      $region93: #{_impl.6} parent=5 // pred_check
        %p1246 = pneg %p1245
      $region94: #{_impl.6} parent=5 // pred_check_branch
        %1248 = sbr.rel (%p1246) target = $region96
      $region95: #{_impl.6} parent=5 // pred_region
        %s1249 = ssub.s32 %s20, 2
        // Predicated region
        $region97: #{_impl.6} parent=95 // pred_check
          %p1250 = pneg %p307
        $region98: #{_impl.6} parent=95 // pred_check_branch
          %1252 = sbr.rel (%p1250) target = $region100
        $region99: #{_impl.6} parent=95 // pred_region
          %s1253 = smul.u32 2, %s31
          %p1254 = scmp.lt.s32.totalorder %s1253, 3
          %s1255 = scalar_select %p1254, %s1253, 3
          %s1256 = smul.addr %s1255, 8
          %s1257 = scalar_lea.vmem %s11, %s1256
        $region100: #{_impl.6} parent=95 // pred_fallthru
          _
      $region96: #{_impl.6} parent=5 // pred_fallthru
        _
    $region6: #{_impl.6} parent=1 // loop_footer
      %s24 = sadd.s32 1, %s20
    $region7: #{_impl.6} parent=1 // loop_footer_branch
      %19 = sbr.rel target = $region3
    $region8: #{_impl.6} parent=1 // loop_exit
      _
    %1258 = vsyncpa [#allocation4], 1
    %s1259 = scalar_lea.sflag [#allocation4], 1
    %1260 = vsyncpa %s1259, 1
    %1261 = vsyncpa [#allocation8], 1
    %1262 = vsyncpa [#allocation5], 1
    %s1263 = scalar_lea.sflag [#allocation5], 1
    %1264 = vsyncpa %s1263, 1

</llo_original>
